<compile_context>
chip_gen: v7x
topology: tpu7x:2x2x1
jax: 0.10.0
libtpu: 0.0.40
codegen_flags: <defaults>
</compile_context>

<pallas_src>
import functools

import jax
import jax.numpy as jnp
import numpy as np
from jax.experimental import pallas as pl
from jax.experimental.pallas import tpu as pltpu


def _round_up(x, m):
    return (x + m - 1) // m * m


def _tpu_hw():
    """Best-effort (physical VMEM bytes, TensorCores per device); safe fallbacks."""
    vmem_bytes = 64 << 20          # conservative default: v7x has the smallest VMEM
    n_cores = 1
    try:
        info = pltpu.get_tpu_info()
        vmem_bytes = int(getattr(info, "vmem_capacity_bytes", vmem_bytes))
        for attr in ("num_cores", "tensorcores_per_chip", "num_tensorcores",
                     "core_count"):
            v = getattr(info, attr, None)
            if v:
                n_cores = max(n_cores, int(v))
                break
    except Exception:
        pass
    try:
        kind = jax.devices()[0].device_kind.lower()
        if any(s in kind for s in ("v4", "v5p", "v7", "7x")):
            n_cores = max(n_cores, 2)      # megacore / 2-TC chips
    except Exception:
        pass
    return vmem_bytes, n_cores


def auvi_kernel(nblk_ref, x_ref, len_ref, wih_ref, whh_ref, b_ref, w1_ref,
                b1_ref, out_ref, h_scr, c_scr, *, Tt, H, compute_dtype):
    """Grid = (batch_blocks, time_blocks); time is the revisited ('arbitrary') axis."""
    b_blk = pl.program_id(0)
    t_blk = pl.program_id(1)
    n_active = nblk_ref[b_blk]     # number of active time blocks for this batch block

    @pl.when(t_blk == 0)
    def _():
        h_scr[...] = jnp.zeros_like(h_scr)
        c_scr[...] = jnp.zeros_like(c_scr)

    @pl.when(t_blk < n_active)
    def _():
        Bt = x_ref.shape[1]
        D = x_ref.shape[2]

        whh = whh_ref[...]         # hoisted loop-invariant recurrent weights

        # Hoisted input projection: ONE wide MXU matmul for the whole time block
        # (Bt % 8 == 0, so merging (Tt, Bt) into the sublane axis is tile-aligned
        # and emits no relayout copy), with the fused LSTM bias added once.
        x_blk = x_ref[...].reshape(Tt * Bt, D)
        gx = (jnp.dot(x_blk, wih_ref[...], preferred_element_type=jnp.float32)
              + b_ref[...])                                      # (Tt*Bt, 4H) f32

        lengths = len_ref[...]                                   # (Bt, 1) int32
        t0 = t_blk * Tt

        h = h_scr[...]                                           # (Bt, H) f32
        c = c_scr[...]

        # Static (fully unrolled) recurrence over the time block; Tt is capped
        # (<= 32) so the unroll stays small and all slices are static,
        # lane-aligned offsets.
        for t in range(Tt):
            gates = gx[t * Bt:(t + 1) * Bt, :] + jnp.dot(
                h.astype(whh.dtype), whh, preferred_element_type=jnp.float32)

            # Gate columns were permuted in the wrapper to [i | f | o | g]:
            sig = jax.nn.sigmoid(gates[:, :3 * H])               # one wide EUP pass
            i_g = sig[:, 0 * H:1 * H]
            f_g = sig[:, 1 * H:2 * H]
            o_g = sig[:, 2 * H:3 * H]
            g_g = jnp.tanh(gates[:, 3 * H:])                     # one wide tanh

            c_new = f_g * c + i_g * g_g
            h_new = o_g * jnp.tanh(c_new)

            # pack_padded_sequence semantics: the state freezes at each
            # sequence's true last step.  Boolean select (single vselect).
            upd = (t0 + t) < lengths                             # (Bt, 1) bool
            h = jnp.where(upd, h_new, h)
            c = jnp.where(upd, c_new, c)

        h_scr[...] = h
        c_scr[...] = c

    @pl.when(t_blk == n_active - 1)
    def _():
        # nn.Dropout(p=0.2) is identity in eval mode; then the Linear head.
        # Emitted at the last *active* block, so skipped trailing blocks do
        # nothing at all.
        # TODO(synk): training-mode dropout mask not applied (inference forward).
        out_ref[...] = (jnp.dot(h_scr[...].astype(compute_dtype), w1_ref[...],
                                preferred_element_type=jnp.float32)
                        + b1_ref[...])


def auvi_subnet(x, lengths, params, *, compute_dtype=jnp.bfloat16,
                recurrent_dtype=None, time_block=None, batch_block=None):
    """x: (batch, seq, in_size) float32; lengths: (batch,) int.

    compute_dtype: dtype of the MXU operands (x, W_ih, W1). bfloat16 is the
      recommended default on all TPU generations (v5e included): it halves the
      weight/x VMEM + DMA footprint and roughly doubles MXU throughput, while
      gates, state and accumulation stay float32.
    recurrent_dtype: dtype of the h @ W_hh operands (defaults to compute_dtype).
      Force float32 on accuracy-sensitive long-sequence paths.
    """
    if recurrent_dtype is None:
        recurrent_dtype = compute_dtype

    B, S, D = x.shape
    H = params["w_hh"].shape[1]
    O = params["w1"].shape[0]

    vmem_bytes, n_cores = _tpu_hw()
    usable_vmem = max(int(vmem_bytes * 3 // 4), 32 << 20)   # 48 MiB on v7x, 96 MiB on v5e/v6e

    # ---- Padded / aligned geometry.
    Hp = _round_up(H, 128)            # gate slices become 128-lane aligned
    Op = _round_up(O, 128)            # lane-dense output -> unmasked stores
    Bp = _round_up(B, 8)              # f32 sublane minimum

    if batch_block is None:
        # Split the batch only when a second TensorCore exists (v7x / megacore);
        # on single-TC v5e/v6e a split doubles the serial recurrence passes.
        Bt = Bp // 2 if (n_cores >= 2 and Bp % 16 == 0) else Bp
    else:
        Bt = batch_block
    assert Bp % Bt == 0 and Bt % 8 == 0

    isz = jnp.dtype(compute_dtype).itemsize
    r_isz = jnp.dtype(recurrent_dtype).itemsize
    if time_block is None:
        # Larger time blocks => fewer grid steps and a wider hoisted x@W_ih
        # matmul.  Keep the f32 gx intermediate + streamed x under ~1/4 of the
        # usable VMEM (generation-aware) and cap the static unroll at 32 steps.
        budget = max(usable_vmem // 4, 2 << 20)
        per_step = Bt * (4 * Hp * 4 + 2 * D * isz)
        Tt = int(max(1, min(S, 32, budget // max(per_step, 1))))
    else:
        Tt = int(min(time_block, S))
    Sp = _round_up(S, Tt)
    n_tblocks = Sp // Tt

    # ---- Repack weights: transpose, reorder gates [i|f|g|o] -> [i|f|o|g],
    # pad each gate block to Hp columns (padded hidden units stay exactly 0).
    def split_gates(w):
        return {"i": w[0 * H:1 * H], "f": w[1 * H:2 * H],
                "g": w[2 * H:3 * H], "o": w[3 * H:4 * H]}

    order = ("i", "f", "o", "g")

    def pack_gate_matrix(w, k_real, k_pad):
        g = split_gates(w)
        out = jnp.zeros((k_pad, 4 * Hp), jnp.float32)
        for k, name in enumerate(order):
            out = out.at[:k_real, k * Hp:k * Hp + H].set(g[name].T)
        return out

    def pack_gate_bias(b):
        g = split_gates(b)
        out = jnp.zeros((1, 4 * Hp), jnp.float32)
        for k, name in enumerate(order):
            out = out.at[0, k * Hp:k * Hp + H].set(g[name])
        return out

    wih_t = pack_gate_matrix(params["w_ih"], D, D).astype(compute_dtype)      # (D, 4Hp)
    whh_t = pack_gate_matrix(params["w_hh"], H, Hp).astype(recurrent_dtype)   # (Hp, 4Hp)
    bias = pack_gate_bias(params["b_ih"] + params["b_hh"])                    # (1, 4Hp) f32
    w1_t = (jnp.zeros((Hp, Op), jnp.float32)
            .at[:H, :O].set(params["w1"].T).astype(compute_dtype))            # (Hp, Op)
    b1 = jnp.zeros((1, Op), jnp.float32).at[0, :O].set(params["b1"])          # (1, Op)

    # ---- Pad x / lengths and go time-major so each step is a leading-axis load.
    x_p = (jnp.zeros((Bp, Sp, D), compute_dtype)
           .at[:B, :S, :].set(x.astype(compute_dtype)))
    x_tm = jnp.transpose(x_p, (1, 0, 2))                                      # (Sp, Bp, D)
    len_pad = jnp.zeros((Bp,), jnp.int32).at[:B].set(lengths.astype(jnp.int32))
    len2d = len_pad.reshape(Bp, 1)

    # Per-batch-block count of active time blocks (scalar-prefetched into SMEM).
    blk_max = len_pad.reshape(Bp // Bt, Bt).max(axis=1)
    nblk = jnp.clip((blk_max + Tt - 1) // Tt, 1, n_tblocks).astype(jnp.int32)

    grid = (Bp // Bt, n_tblocks)

    in_specs = [
        # x: streamed per time block; the index is clamped to the last active
        # block, so skipped blocks re-use the previous index (DMA elided).
        pl.BlockSpec((Tt, Bt, D),
                     lambda b, t, nb: (jnp.minimum(t, nb[b] - 1), b, 0)),
        pl.BlockSpec((Bt, 1), lambda b, t, nb: (b, 0)),            # lengths
        pl.BlockSpec((D, 4 * Hp), lambda b, t, nb: (0, 0)),        # W_ih^T
        pl.BlockSpec((Hp, 4 * Hp), lambda b, t, nb: (0, 0)),       # W_hh^T
        pl.BlockSpec((1, 4 * Hp), lambda b, t, nb: (0, 0)),        # fused bias
        pl.BlockSpec((Hp, Op), lambda b, t, nb: (0, 0)),           # W1^T
        pl.BlockSpec((1, Op), lambda b, t, nb: (0, 0)),            # b1
    ]
    out_specs = pl.BlockSpec((Bt, Op), lambda b, t, nb: (b, 0))

    # VMEM budget estimate (double-buffered inputs + scratch + intermediates),
    # capped by the generation-specific usable VMEM derived above.
    est = (2 * Tt * Bt * D * isz                 # x blocks (double-buffered)
           + 2 * D * 4 * Hp * isz                # W_ih^T
           + 2 * Hp * 4 * Hp * r_isz             # W_hh^T
           + 2 * (4 * Hp + Op) * 4               # biases
           + 2 * Hp * Op * isz                   # W1^T
           + 2 * Bt * Op * 4                     # output block
           + 2 * Bt * Hp * 4                     # h/c scratch
           + Tt * Bt * 4 * Hp * 4)               # f32 gx intermediate
    vmem_limit = int(min(max(2 * est, 16 << 20), usable_vmem))

    kernel = functools.partial(auvi_kernel, Tt=Tt, H=Hp,
                               compute_dtype=compute_dtype)

    y = pl.pallas_call(
        kernel,
        out_shape=jax.ShapeDtypeStruct((Bp, Op), jnp.float32),
        grid_spec=pltpu.PrefetchScalarGridSpec(
            num_scalar_prefetch=1,
            grid=grid,
            in_specs=in_specs,
            out_specs=out_specs,
            scratch_shapes=[pltpu.VMEM((Bt, Hp), jnp.float32),
                            pltpu.VMEM((Bt, Hp), jnp.float32)],
        ),
        compiler_params=pltpu.CompilerParams(
            dimension_semantics=("parallel", "arbitrary"),
            vmem_limit_bytes=vmem_limit),
    )(nblk, x_tm, len2d, wih_t, whh_t, bias, w1_t, b1)

    return y[:B, :O]


def auvi_subnet_ref(x, lengths, params):
    """Pure-JAX reference matching packed-LSTM + Linear forward semantics."""
    B, S, D = x.shape
    H = params["w_hh"].shape[1]
    h = jnp.zeros((B, H), jnp.float32)
    c = jnp.zeros((B, H), jnp.float32)
    bias = params["b_ih"] + params["b_hh"]
    for t in range(S):
        gates = x[:, t, :] @ params["w_ih"].T + h @ params["w_hh"].T + bias
        i_g = jax.nn.sigmoid(gates[:, 0 * H:1 * H])
        f_g = jax.nn.sigmoid(gates[:, 1 * H:2 * H])
        g_g = jnp.tanh(gates[:, 2 * H:3 * H])
        o_g = jax.nn.sigmoid(gates[:, 3 * H:4 * H])
        c_new = f_g * c + i_g * g_g
        h_new = o_g * jnp.tanh(c_new)
        m = (t < lengths)[:, None]
        h = jnp.where(m, h_new, h)
        c = jnp.where(m, c_new, c)
    return h @ params["w1"].T + params["b1"]


if __name__ == "__main__":
    B, S, D, H, O = 4, 8, 16, 32, 16

    key = jax.random.PRNGKey(0)
    ks = jax.random.split(key, 7)
    params = {
        "w_ih": 0.1 * jax.random.normal(ks[0], (4 * H, D), jnp.float32),
        "w_hh": 0.1 * jax.random.normal(ks[1], (4 * H, H), jnp.float32),
        "b_ih": 0.1 * jax.random.normal(ks[2], (4 * H,), jnp.float32),
        "b_hh": 0.1 * jax.random.normal(ks[3], (4 * H,), jnp.float32),
        "w1":   0.1 * jax.random.normal(ks[4], (O, H), jnp.float32),
        "b1":   0.1 * jax.random.normal(ks[5], (O,), jnp.float32),
    }
    x = jax.random.normal(ks[6], (B, S, D), jnp.float32)
    lengths = jnp.array([8, 5, 3, 6], jnp.int32)

    y_ref = auvi_subnet_ref(x, lengths, params)

    # f32 MXU operands, auto time block (single block at S=8): exact check.
    y32 = jax.block_until_ready(
        auvi_subnet(x, lengths, params, compute_dtype=jnp.float32))
    np.testing.assert_allclose(np.asarray(y32), np.asarray(y_ref),
                               rtol=1e-5, atol=1e-5)
    assert y32.shape == (B, O)

    # f32, forced small time block -> exercises the multi-time-block recurrence
    # and the clamped (skip-capable) index maps: exact check.
    y32b = jax.block_until_ready(
        auvi_subnet(x, lengths, params, compute_dtype=jnp.float32, time_block=2))
    np.testing.assert_allclose(np.asarray(y32b), np.asarray(y_ref),
                               rtol=1e-5, atol=1e-5)

    # Shorter lengths than S with small time blocks -> the trailing time block
    # is fully frozen and skipped (no DMA / no compute): exact check.
    lengths_short = jnp.array([4, 5, 3, 6], jnp.int32)
    y_ref_short = auvi_subnet_ref(x, lengths_short, params)
    y32c = jax.block_until_ready(
        auvi_subnet(x, lengths_short, params, compute_dtype=jnp.float32,
                    time_block=2))
    np.testing.assert_allclose(np.asarray(y32c), np.asarray(y_ref_short),
                               rtol=1e-5, atol=1e-5)

    # bf16 MXU operands (recommended default on v5e/v6e/v7x), f32 gates/state:
    # loose check.
    ybf = jax.block_until_ready(
        auvi_subnet(x, lengths, params, compute_dtype=jnp.bfloat16))
    np.testing.assert_allclose(np.asarray(ybf), np.asarray(y_ref),
                               rtol=5e-2, atol=5e-2)
    assert ybf.shape == (B, O)

    print("KERNEL_OK")
</pallas_src>

<mosaic_0001>
module attributes {stable_mosaic.version = 11 : i64} {
  func.func @auvi_kernel(%arg0: i32, %arg1: i32, %arg2: memref<1xi32, #tpu.memory_space<smem>>, %arg3: memref<8x8x16xf32, #tpu.memory_space<vmem>>, %arg4: memref<8x1xi32, #tpu.memory_space<vmem>>, %arg5: memref<16x512xf32, #tpu.memory_space<vmem>>, %arg6: memref<128x512xf32, #tpu.memory_space<vmem>>, %arg7: memref<1x512xf32, #tpu.memory_space<vmem>>, %arg8: memref<128x128xf32, #tpu.memory_space<vmem>>, %arg9: memref<1x128xf32, #tpu.memory_space<vmem>>, %arg10: memref<8x128xf32, #tpu.memory_space<vmem>>, %arg11: memref<8x128xf32, #tpu.memory_space<vmem>>, %arg12: memref<8x128xf32, #tpu.memory_space<vmem>>) attributes {dimension_semantics = [#tpu.dimension_semantics<parallel>, #tpu.dimension_semantics<arbitrary>], iteration_bounds = array<i64: 1, 1>, scalar_prefetch = 1 : i64, scratch_operands = 2 : i64, tpu.core_type = #tpu.core_type<tc>, window_params = [{transform_indices = @transform_0, window_bounds = array<i64: 8, 8, 16>}, {transform_indices = @transform_1, window_bounds = array<i64: 8, 1>}, {pipeline_mode = #tpu.pipeline_mode<synchronous>, transform_indices = @transform_2, window_bounds = array<i64: 16, 512>}, {pipeline_mode = #tpu.pipeline_mode<synchronous>, transform_indices = @transform_3, window_bounds = array<i64: 128, 512>}, {pipeline_mode = #tpu.pipeline_mode<synchronous>, transform_indices = @transform_4, window_bounds = array<i64: 1, 512>}, {pipeline_mode = #tpu.pipeline_mode<synchronous>, transform_indices = @transform_5, window_bounds = array<i64: 128, 128>}, {pipeline_mode = #tpu.pipeline_mode<synchronous>, transform_indices = @transform_6, window_bounds = array<i64: 1, 128>}, {transform_indices = @transform_7, window_bounds = array<i64: 8, 128>}]} {
    %0 = arith.index_cast %arg0 : i32 to index
    %1 = memref.load %arg2[%0] : memref<1xi32, #tpu.memory_space<smem>>
    %c0_i32 = arith.constant 0 : i32
    %2 = arith.cmpi eq, %arg1, %c0_i32 : i32
    %3 = arith.extui %2 : i1 to i32
    %c0_i32_0 = arith.constant 0 : i32
    %4 = arith.cmpi ne, %3, %c0_i32_0 : i32
    scf.if %4 {
      %cst = arith.constant 0.000000e+00 : f32
      %12 = vector.broadcast %cst : f32 to vector<8x128xf32>
      %c0 = arith.constant 0 : index
      %c0_3 = arith.constant 0 : index
      %13 = vector.load %arg11[%c0, %c0_3] : memref<8x128xf32, #tpu.memory_space<vmem>>, vector<8x128xf32>
      tpu.vector_store %arg11[%c0, %c0_3], %12 {strides = array<i32>} : memref<8x128xf32, #tpu.memory_space<vmem>>, vector<8x128xf32>,
      %cst_4 = arith.constant 0.000000e+00 : f32
      %14 = vector.broadcast %cst_4 : f32 to vector<8x128xf32>
      %c0_5 = arith.constant 0 : index
      %c0_6 = arith.constant 0 : index
      %15 = vector.load %arg12[%c0_5, %c0_6] : memref<8x128xf32, #tpu.memory_space<vmem>>, vector<8x128xf32>
      tpu.vector_store %arg12[%c0_5, %c0_6], %14 {strides = array<i32>} : memref<8x128xf32, #tpu.memory_space<vmem>>, vector<8x128xf32>,
    } else {
    }
    %5 = arith.cmpi slt, %arg1, %1 : i32
    %6 = arith.extui %5 : i1 to i32
    %c0_i32_1 = arith.constant 0 : i32
    %7 = arith.cmpi ne, %6, %c0_i32_1 : i32
    scf.if %7 {
      %c0 = arith.constant 0 : index
      %c0_3 = arith.constant 0 : index
      %12 = vector.load %arg6[%c0, %c0_3] : memref<128x512xf32, #tpu.memory_space<vmem>>, vector<128x512xf32>
      %c0_4 = arith.constant 0 : index
      %c0_5 = arith.constant 0 : index
      %c0_6 = arith.constant 0 : index
      %13 = vector.load %arg3[%c0_4, %c0_5, %c0_6] : memref<8x8x16xf32, #tpu.memory_space<vmem>>, vector<8x8x16xf32>
      %14 = vector.shape_cast %13 : vector<8x8x16xf32> to vector<64x16xf32>
      %c0_7 = arith.constant 0 : index
      %c0_8 = arith.constant 0 : index
      %15 = vector.load %arg5[%c0_7, %c0_8] : memref<16x512xf32, #tpu.memory_space<vmem>>, vector<16x512xf32>
      %cst = arith.constant dense<0.000000e+00> : vector<64x512xf32>
      %16 = tpu.matmul %14, %15, %cst {dimension_numbers = #tpu.dot_dimension_numbers<[1], [0], [0], [1], [0, 0, 1, 1], [], []>} : vector<64x16xf32>, vector<16x512xf32>, vector<64x512xf32> -> vector<64x512xf32>
      %c0_9 = arith.constant 0 : index
      %c0_10 = arith.constant 0 : index
      %17 = vector.load %arg7[%c0_9, %c0_10] : memref<1x512xf32, #tpu.memory_space<vmem>>, vector<1x512xf32>
      %18 = vector.broadcast %17 : vector<1x512xf32> to vector<64x512xf32>
      %19 = arith.addf %16, %18 : vector<64x512xf32>
      %c0_11 = arith.constant 0 : index
      %c0_12 = arith.constant 0 : index
      %20 = vector.load %arg4[%c0_11, %c0_12] : memref<8x1xi32, #tpu.memory_space<vmem>>, vector<8x1xi32>
      %c8_i32 = arith.constant 8 : i32
      %21 = arith.muli %arg1, %c8_i32 : i32
      %c0_13 = arith.constant 0 : index
      %c0_14 = arith.constant 0 : index
      %22 = vector.load %arg11[%c0_13, %c0_14] : memref<8x128xf32, #tpu.memory_space<vmem>>, vector<8x128xf32>
      %c0_15 = arith.constant 0 : index
      %c0_16 = arith.constant 0 : index
      %23 = vector.load %arg12[%c0_15, %c0_16] : memref<8x128xf32, #tpu.memory_space<vmem>>, vector<8x128xf32>
      %24 = vector.extract_strided_slice %19 {offsets = [0, 0], sizes = [8, 512], strides = [1, 1]} : vector<64x512xf32> to vector<8x512xf32>
      %cst_17 = arith.constant dense<0.000000e+00> : vector<8x512xf32>
      %25 = tpu.matmul %22, %12, %cst_17 {dimension_numbers = #tpu.dot_dimension_numbers<[1], [0], [0], [1], [0, 0, 1, 1], [], []>} : vector<8x128xf32>, vector<128x512xf32>, vector<8x512xf32> -> vector<8x512xf32>
      %26 = arith.addf %24, %25 : vector<8x512xf32>
      %27 = vector.extract_strided_slice %26 {offsets = [0, 0], sizes = [8, 384], strides = [1, 1]} : vector<8x512xf32> to vector<8x384xf32>
      %28 = arith.negf %27 : vector<8x384xf32>
      %29 = math.exp %28 : vector<8x384xf32>
      %cst_18 = arith.constant 1.000000e+00 : f32
      %30 = vector.broadcast %cst_18 : f32 to vector<8x384xf32>
      %31 = arith.addf %30, %29 : vector<8x384xf32>
      %32 = arith.divf %30, %31 : vector<8x384xf32>
      %33 = vector.extract_strided_slice %32 {offsets = [0, 0], sizes = [8, 128], strides = [1, 1]} : vector<8x384xf32> to vector<8x128xf32>
      %34 = vector.extract_strided_slice %32 {offsets = [0, 128], sizes = [8, 128], strides = [1, 1]} : vector<8x384xf32> to vector<8x128xf32>
      %35 = vector.extract_strided_slice %32 {offsets = [0, 256], sizes = [8, 128], strides = [1, 1]} : vector<8x384xf32> to vector<8x128xf32>
      %36 = vector.extract_strided_slice %26 {offsets = [0, 384], sizes = [8, 128], strides = [1, 1]} : vector<8x512xf32> to vector<8x128xf32>
      %37 = math.tanh %36 : vector<8x128xf32>
      %38 = arith.mulf %34, %23 : vector<8x128xf32>
      %39 = arith.mulf %33, %37 : vector<8x128xf32>
      %40 = arith.addf %38, %39 : vector<8x128xf32>
      %41 = math.tanh %40 : vector<8x128xf32>
      %42 = arith.mulf %35, %41 : vector<8x128xf32>
      %c0_i32_19 = arith.constant 0 : i32
      %43 = arith.addi %21, %c0_i32_19 : i32
      %44 = vector.broadcast %43 : i32 to vector<8x1xi32>
      %45 = arith.cmpi slt, %44, %20 : vector<8x1xi32>
      %46 = vector.shape_cast %45 : vector<8x1xi1> to vector<8x1xi1>
      %47 = vector.broadcast %46 : vector<8x1xi1> to vector<8x128xi1>
      %48 = arith.select %47, %42, %22 : vector<8x128xi1>, vector<8x128xf32>
      %49 = vector.shape_cast %45 : vector<8x1xi1> to vector<8x1xi1>
      %50 = vector.broadcast %49 : vector<8x1xi1> to vector<8x128xi1>
      %51 = arith.select %50, %40, %23 : vector<8x128xi1>, vector<8x128xf32>
      %52 = vector.extract_strided_slice %19 {offsets = [8, 0], sizes = [8, 512], strides = [1, 1]} : vector<64x512xf32> to vector<8x512xf32>
      %cst_20 = arith.constant dense<0.000000e+00> : vector<8x512xf32>
      %53 = tpu.matmul %48, %12, %cst_20 {dimension_numbers = #tpu.dot_dimension_numbers<[1], [0], [0], [1], [0, 0, 1, 1], [], []>} : vector<8x128xf32>, vector<128x512xf32>, vector<8x512xf32> -> vector<8x512xf32>
      %54 = arith.addf %52, %53 : vector<8x512xf32>
      %55 = vector.extract_strided_slice %54 {offsets = [0, 0], sizes = [8, 384], strides = [1, 1]} : vector<8x512xf32> to vector<8x384xf32>
      %56 = arith.negf %55 : vector<8x384xf32>
      %57 = math.exp %56 : vector<8x384xf32>
      %cst_21 = arith.constant 1.000000e+00 : f32
      %58 = vector.broadcast %cst_21 : f32 to vector<8x384xf32>
      %59 = arith.addf %58, %57 : vector<8x384xf32>
      %60 = arith.divf %58, %59 : vector<8x384xf32>
      %61 = vector.extract_strided_slice %60 {offsets = [0, 0], sizes = [8, 128], strides = [1, 1]} : vector<8x384xf32> to vector<8x128xf32>
      %62 = vector.extract_strided_slice %60 {offsets = [0, 128], sizes = [8, 128], strides = [1, 1]} : vector<8x384xf32> to vector<8x128xf32>
      %63 = vector.extract_strided_slice %60 {offsets = [0, 256], sizes = [8, 128], strides = [1, 1]} : vector<8x384xf32> to vector<8x128xf32>
      %64 = vector.extract_strided_slice %54 {offsets = [0, 384], sizes = [8, 128], strides = [1, 1]} : vector<8x512xf32> to vector<8x128xf32>
      %65 = math.tanh %64 : vector<8x128xf32>
      %66 = arith.mulf %62, %51 : vector<8x128xf32>
      %67 = arith.mulf %61, %65 : vector<8x128xf32>
      %68 = arith.addf %66, %67 : vector<8x128xf32>
      %69 = math.tanh %68 : vector<8x128xf32>
      %70 = arith.mulf %63, %69 : vector<8x128xf32>
      %c1_i32_22 = arith.constant 1 : i32
      %71 = arith.addi %21, %c1_i32_22 : i32
      %72 = vector.broadcast %71 : i32 to vector<8x1xi32>
      %73 = arith.cmpi slt, %72, %20 : vector<8x1xi32>
      %74 = vector.shape_cast %73 : vector<8x1xi1> to vector<8x1xi1>
      %75 = vector.broadcast %74 : vector<8x1xi1> to vector<8x128xi1>
      %76 = arith.select %75, %70, %48 : vector<8x128xi1>, vector<8x128xf32>
      %77 = vector.shape_cast %73 : vector<8x1xi1> to vector<8x1xi1>
      %78 = vector.broadcast %77 : vector<8x1xi1> to vector<8x128xi1>
      %79 = arith.select %78, %68, %51 : vector<8x128xi1>, vector<8x128xf32>
      %80 = vector.extract_strided_slice %19 {offsets = [16, 0], sizes = [8, 512], strides = [1, 1]} : vector<64x512xf32> to vector<8x512xf32>
      %cst_23 = arith.constant dense<0.000000e+00> : vector<8x512xf32>
      %81 = tpu.matmul %76, %12, %cst_23 {dimension_numbers = #tpu.dot_dimension_numbers<[1], [0], [0], [1], [0, 0, 1, 1], [], []>} : vector<8x128xf32>, vector<128x512xf32>, vector<8x512xf32> -> vector<8x512xf32>
      %82 = arith.addf %80, %81 : vector<8x512xf32>
      %83 = vector.extract_strided_slice %82 {offsets = [0, 0], sizes = [8, 384], strides = [1, 1]} : vector<8x512xf32> to vector<8x384xf32>
      %84 = arith.negf %83 : vector<8x384xf32>
      %85 = math.exp %84 : vector<8x384xf32>
      %cst_24 = arith.constant 1.000000e+00 : f32
      %86 = vector.broadcast %cst_24 : f32 to vector<8x384xf32>
      %87 = arith.addf %86, %85 : vector<8x384xf32>
      %88 = arith.divf %86, %87 : vector<8x384xf32>
      %89 = vector.extract_strided_slice %88 {offsets = [0, 0], sizes = [8, 128], strides = [1, 1]} : vector<8x384xf32> to vector<8x128xf32>
      %90 = vector.extract_strided_slice %88 {offsets = [0, 128], sizes = [8, 128], strides = [1, 1]} : vector<8x384xf32> to vector<8x128xf32>
      %91 = vector.extract_strided_slice %88 {offsets = [0, 256], sizes = [8, 128], strides = [1, 1]} : vector<8x384xf32> to vector<8x128xf32>
      %92 = vector.extract_strided_slice %82 {offsets = [0, 384], sizes = [8, 128], strides = [1, 1]} : vector<8x512xf32> to vector<8x128xf32>
      %93 = math.tanh %92 : vector<8x128xf32>
      %94 = arith.mulf %90, %79 : vector<8x128xf32>
      %95 = arith.mulf %89, %93 : vector<8x128xf32>
      %96 = arith.addf %94, %95 : vector<8x128xf32>
      %97 = math.tanh %96 : vector<8x128xf32>
      %98 = arith.mulf %91, %97 : vector<8x128xf32>
      %c2_i32 = arith.constant 2 : i32
      %99 = arith.addi %21, %c2_i32 : i32
      %100 = vector.broadcast %99 : i32 to vector<8x1xi32>
      %101 = arith.cmpi slt, %100, %20 : vector<8x1xi32>
      %102 = vector.shape_cast %101 : vector<8x1xi1> to vector<8x1xi1>
      %103 = vector.broadcast %102 : vector<8x1xi1> to vector<8x128xi1>
      %104 = arith.select %103, %98, %76 : vector<8x128xi1>, vector<8x128xf32>
      %105 = vector.shape_cast %101 : vector<8x1xi1> to vector<8x1xi1>
      %106 = vector.broadcast %105 : vector<8x1xi1> to vector<8x128xi1>
      %107 = arith.select %106, %96, %79 : vector<8x128xi1>, vector<8x128xf32>
      %108 = vector.extract_strided_slice %19 {offsets = [24, 0], sizes = [8, 512], strides = [1, 1]} : vector<64x512xf32> to vector<8x512xf32>
      %cst_25 = arith.constant dense<0.000000e+00> : vector<8x512xf32>
      %109 = tpu.matmul %104, %12, %cst_25 {dimension_numbers = #tpu.dot_dimension_numbers<[1], [0], [0], [1], [0, 0, 1, 1], [], []>} : vector<8x128xf32>, vector<128x512xf32>, vector<8x512xf32> -> vector<8x512xf32>
      %110 = arith.addf %108, %109 : vector<8x512xf32>
      %111 = vector.extract_strided_slice %110 {offsets = [0, 0], sizes = [8, 384], strides = [1, 1]} : vector<8x512xf32> to vector<8x384xf32>
      %112 = arith.negf %111 : vector<8x384xf32>
      %113 = math.exp %112 : vector<8x384xf32>
      %cst_26 = arith.constant 1.000000e+00 : f32
      %114 = vector.broadcast %cst_26 : f32 to vector<8x384xf32>
      %115 = arith.addf %114, %113 : vector<8x384xf32>
      %116 = arith.divf %114, %115 : vector<8x384xf32>
      %117 = vector.extract_strided_slice %116 {offsets = [0, 0], sizes = [8, 128], strides = [1, 1]} : vector<8x384xf32> to vector<8x128xf32>
      %118 = vector.extract_strided_slice %116 {offsets = [0, 128], sizes = [8, 128], strides = [1, 1]} : vector<8x384xf32> to vector<8x128xf32>
      %119 = vector.extract_strided_slice %116 {offsets = [0, 256], sizes = [8, 128], strides = [1, 1]} : vector<8x384xf32> to vector<8x128xf32>
      %120 = vector.extract_strided_slice %110 {offsets = [0, 384], sizes = [8, 128], strides = [1, 1]} : vector<8x512xf32> to vector<8x128xf32>
      %121 = math.tanh %120 : vector<8x128xf32>
      %122 = arith.mulf %118, %107 : vector<8x128xf32>
      %123 = arith.mulf %117, %121 : vector<8x128xf32>
      %124 = arith.addf %122, %123 : vector<8x128xf32>
      %125 = math.tanh %124 : vector<8x128xf32>
      %126 = arith.mulf %119, %125 : vector<8x128xf32>
      %c3_i32 = arith.constant 3 : i32
      %127 = arith.addi %21, %c3_i32 : i32
      %128 = vector.broadcast %127 : i32 to vector<8x1xi32>
      %129 = arith.cmpi slt, %128, %20 : vector<8x1xi32>
      %130 = vector.shape_cast %129 : vector<8x1xi1> to vector<8x1xi1>
      %131 = vector.broadcast %130 : vector<8x1xi1> to vector<8x128xi1>
      %132 = arith.select %131, %126, %104 : vector<8x128xi1>, vector<8x128xf32>
      %133 = vector.shape_cast %129 : vector<8x1xi1> to vector<8x1xi1>
      %134 = vector.broadcast %133 : vector<8x1xi1> to vector<8x128xi1>
      %135 = arith.select %134, %124, %107 : vector<8x128xi1>, vector<8x128xf32>
      %136 = vector.extract_strided_slice %19 {offsets = [32, 0], sizes = [8, 512], strides = [1, 1]} : vector<64x512xf32> to vector<8x512xf32>
      %cst_27 = arith.constant dense<0.000000e+00> : vector<8x512xf32>
      %137 = tpu.matmul %132, %12, %cst_27 {dimension_numbers = #tpu.dot_dimension_numbers<[1], [0], [0], [1], [0, 0, 1, 1], [], []>} : vector<8x128xf32>, vector<128x512xf32>, vector<8x512xf32> -> vector<8x512xf32>
      %138 = arith.addf %136, %137 : vector<8x512xf32>
      %139 = vector.extract_strided_slice %138 {offsets = [0, 0], sizes = [8, 384], strides = [1, 1]} : vector<8x512xf32> to vector<8x384xf32>
      %140 = arith.negf %139 : vector<8x384xf32>
      %141 = math.exp %140 : vector<8x384xf32>
      %cst_28 = arith.constant 1.000000e+00 : f32
      %142 = vector.broadcast %cst_28 : f32 to vector<8x384xf32>
      %143 = arith.addf %142, %141 : vector<8x384xf32>
      %144 = arith.divf %142, %143 : vector<8x384xf32>
      %145 = vector.extract_strided_slice %144 {offsets = [0, 0], sizes = [8, 128], strides = [1, 1]} : vector<8x384xf32> to vector<8x128xf32>
      %146 = vector.extract_strided_slice %144 {offsets = [0, 128], sizes = [8, 128], strides = [1, 1]} : vector<8x384xf32> to vector<8x128xf32>
      %147 = vector.extract_strided_slice %144 {offsets = [0, 256], sizes = [8, 128], strides = [1, 1]} : vector<8x384xf32> to vector<8x128xf32>
      %148 = vector.extract_strided_slice %138 {offsets = [0, 384], sizes = [8, 128], strides = [1, 1]} : vector<8x512xf32> to vector<8x128xf32>
      %149 = math.tanh %148 : vector<8x128xf32>
      %150 = arith.mulf %146, %135 : vector<8x128xf32>
      %151 = arith.mulf %145, %149 : vector<8x128xf32>
      %152 = arith.addf %150, %151 : vector<8x128xf32>
      %153 = math.tanh %152 : vector<8x128xf32>
      %154 = arith.mulf %147, %153 : vector<8x128xf32>
      %c4_i32 = arith.constant 4 : i32
      %155 = arith.addi %21, %c4_i32 : i32
      %156 = vector.broadcast %155 : i32 to vector<8x1xi32>
      %157 = arith.cmpi slt, %156, %20 : vector<8x1xi32>
      %158 = vector.shape_cast %157 : vector<8x1xi1> to vector<8x1xi1>
      %159 = vector.broadcast %158 : vector<8x1xi1> to vector<8x128xi1>
      %160 = arith.select %159, %154, %132 : vector<8x128xi1>, vector<8x128xf32>
      %161 = vector.shape_cast %157 : vector<8x1xi1> to vector<8x1xi1>
      %162 = vector.broadcast %161 : vector<8x1xi1> to vector<8x128xi1>
      %163 = arith.select %162, %152, %135 : vector<8x128xi1>, vector<8x128xf32>
      %164 = vector.extract_strided_slice %19 {offsets = [40, 0], sizes = [8, 512], strides = [1, 1]} : vector<64x512xf32> to vector<8x512xf32>
      %cst_29 = arith.constant dense<0.000000e+00> : vector<8x512xf32>
      %165 = tpu.matmul %160, %12, %cst_29 {dimension_numbers = #tpu.dot_dimension_numbers<[1], [0], [0], [1], [0, 0, 1, 1], [], []>} : vector<8x128xf32>, vector<128x512xf32>, vector<8x512xf32> -> vector<8x512xf32>
      %166 = arith.addf %164, %165 : vector<8x512xf32>
      %167 = vector.extract_strided_slice %166 {offsets = [0, 0], sizes = [8, 384], strides = [1, 1]} : vector<8x512xf32> to vector<8x384xf32>
      %168 = arith.negf %167 : vector<8x384xf32>
      %169 = math.exp %168 : vector<8x384xf32>
      %cst_30 = arith.constant 1.000000e+00 : f32
      %170 = vector.broadcast %cst_30 : f32 to vector<8x384xf32>
      %171 = arith.addf %170, %169 : vector<8x384xf32>
      %172 = arith.divf %170, %171 : vector<8x384xf32>
      %173 = vector.extract_strided_slice %172 {offsets = [0, 0], sizes = [8, 128], strides = [1, 1]} : vector<8x384xf32> to vector<8x128xf32>
      %174 = vector.extract_strided_slice %172 {offsets = [0, 128], sizes = [8, 128], strides = [1, 1]} : vector<8x384xf32> to vector<8x128xf32>
      %175 = vector.extract_strided_slice %172 {offsets = [0, 256], sizes = [8, 128], strides = [1, 1]} : vector<8x384xf32> to vector<8x128xf32>
      %176 = vector.extract_strided_slice %166 {offsets = [0, 384], sizes = [8, 128], strides = [1, 1]} : vector<8x512xf32> to vector<8x128xf32>
      %177 = math.tanh %176 : vector<8x128xf32>
      %178 = arith.mulf %174, %163 : vector<8x128xf32>
      %179 = arith.mulf %173, %177 : vector<8x128xf32>
      %180 = arith.addf %178, %179 : vector<8x128xf32>
      %181 = math.tanh %180 : vector<8x128xf32>
      %182 = arith.mulf %175, %181 : vector<8x128xf32>
      %c5_i32 = arith.constant 5 : i32
      %183 = arith.addi %21, %c5_i32 : i32
      %184 = vector.broadcast %183 : i32 to vector<8x1xi32>
      %185 = arith.cmpi slt, %184, %20 : vector<8x1xi32>
      %186 = vector.shape_cast %185 : vector<8x1xi1> to vector<8x1xi1>
      %187 = vector.broadcast %186 : vector<8x1xi1> to vector<8x128xi1>
      %188 = arith.select %187, %182, %160 : vector<8x128xi1>, vector<8x128xf32>
      %189 = vector.shape_cast %185 : vector<8x1xi1> to vector<8x1xi1>
      %190 = vector.broadcast %189 : vector<8x1xi1> to vector<8x128xi1>
      %191 = arith.select %190, %180, %163 : vector<8x128xi1>, vector<8x128xf32>
      %192 = vector.extract_strided_slice %19 {offsets = [48, 0], sizes = [8, 512], strides = [1, 1]} : vector<64x512xf32> to vector<8x512xf32>
      %cst_31 = arith.constant dense<0.000000e+00> : vector<8x512xf32>
      %193 = tpu.matmul %188, %12, %cst_31 {dimension_numbers = #tpu.dot_dimension_numbers<[1], [0], [0], [1], [0, 0, 1, 1], [], []>} : vector<8x128xf32>, vector<128x512xf32>, vector<8x512xf32> -> vector<8x512xf32>
      %194 = arith.addf %192, %193 : vector<8x512xf32>
      %195 = vector.extract_strided_slice %194 {offsets = [0, 0], sizes = [8, 384], strides = [1, 1]} : vector<8x512xf32> to vector<8x384xf32>
      %196 = arith.negf %195 : vector<8x384xf32>
      %197 = math.exp %196 : vector<8x384xf32>
      %cst_32 = arith.constant 1.000000e+00 : f32
      %198 = vector.broadcast %cst_32 : f32 to vector<8x384xf32>
      %199 = arith.addf %198, %197 : vector<8x384xf32>
      %200 = arith.divf %198, %199 : vector<8x384xf32>
      %201 = vector.extract_strided_slice %200 {offsets = [0, 0], sizes = [8, 128], strides = [1, 1]} : vector<8x384xf32> to vector<8x128xf32>
      %202 = vector.extract_strided_slice %200 {offsets = [0, 128], sizes = [8, 128], strides = [1, 1]} : vector<8x384xf32> to vector<8x128xf32>
      %203 = vector.extract_strided_slice %200 {offsets = [0, 256], sizes = [8, 128], strides = [1, 1]} : vector<8x384xf32> to vector<8x128xf32>
      %204 = vector.extract_strided_slice %194 {offsets = [0, 384], sizes = [8, 128], strides = [1, 1]} : vector<8x512xf32> to vector<8x128xf32>
      %205 = math.tanh %204 : vector<8x128xf32>
      %206 = arith.mulf %202, %191 : vector<8x128xf32>
      %207 = arith.mulf %201, %205 : vector<8x128xf32>
      %208 = arith.addf %206, %207 : vector<8x128xf32>
      %209 = math.tanh %208 : vector<8x128xf32>
      %210 = arith.mulf %203, %209 : vector<8x128xf32>
      %c6_i32 = arith.constant 6 : i32
      %211 = arith.addi %21, %c6_i32 : i32
      %212 = vector.broadcast %211 : i32 to vector<8x1xi32>
      %213 = arith.cmpi slt, %212, %20 : vector<8x1xi32>
      %214 = vector.shape_cast %213 : vector<8x1xi1> to vector<8x1xi1>
      %215 = vector.broadcast %214 : vector<8x1xi1> to vector<8x128xi1>
      %216 = arith.select %215, %210, %188 : vector<8x128xi1>, vector<8x128xf32>
      %217 = vector.shape_cast %213 : vector<8x1xi1> to vector<8x1xi1>
      %218 = vector.broadcast %217 : vector<8x1xi1> to vector<8x128xi1>
      %219 = arith.select %218, %208, %191 : vector<8x128xi1>, vector<8x128xf32>
      %220 = vector.extract_strided_slice %19 {offsets = [56, 0], sizes = [8, 512], strides = [1, 1]} : vector<64x512xf32> to vector<8x512xf32>
      %cst_33 = arith.constant dense<0.000000e+00> : vector<8x512xf32>
      %221 = tpu.matmul %216, %12, %cst_33 {dimension_numbers = #tpu.dot_dimension_numbers<[1], [0], [0], [1], [0, 0, 1, 1], [], []>} : vector<8x128xf32>, vector<128x512xf32>, vector<8x512xf32> -> vector<8x512xf32>
      %222 = arith.addf %220, %221 : vector<8x512xf32>
      %223 = vector.extract_strided_slice %222 {offsets = [0, 0], sizes = [8, 384], strides = [1, 1]} : vector<8x512xf32> to vector<8x384xf32>
      %224 = arith.negf %223 : vector<8x384xf32>
      %225 = math.exp %224 : vector<8x384xf32>
      %cst_34 = arith.constant 1.000000e+00 : f32
      %226 = vector.broadcast %cst_34 : f32 to vector<8x384xf32>
      %227 = arith.addf %226, %225 : vector<8x384xf32>
      %228 = arith.divf %226, %227 : vector<8x384xf32>
      %229 = vector.extract_strided_slice %228 {offsets = [0, 0], sizes = [8, 128], strides = [1, 1]} : vector<8x384xf32> to vector<8x128xf32>
      %230 = vector.extract_strided_slice %228 {offsets = [0, 128], sizes = [8, 128], strides = [1, 1]} : vector<8x384xf32> to vector<8x128xf32>
      %231 = vector.extract_strided_slice %228 {offsets = [0, 256], sizes = [8, 128], strides = [1, 1]} : vector<8x384xf32> to vector<8x128xf32>
      %232 = vector.extract_strided_slice %222 {offsets = [0, 384], sizes = [8, 128], strides = [1, 1]} : vector<8x512xf32> to vector<8x128xf32>
      %233 = math.tanh %232 : vector<8x128xf32>
      %234 = arith.mulf %230, %219 : vector<8x128xf32>
      %235 = arith.mulf %229, %233 : vector<8x128xf32>
      %236 = arith.addf %234, %235 : vector<8x128xf32>
      %237 = math.tanh %236 : vector<8x128xf32>
      %238 = arith.mulf %231, %237 : vector<8x128xf32>
      %c7_i32 = arith.constant 7 : i32
      %239 = arith.addi %21, %c7_i32 : i32
      %240 = vector.broadcast %239 : i32 to vector<8x1xi32>
      %241 = arith.cmpi slt, %240, %20 : vector<8x1xi32>
      %242 = vector.shape_cast %241 : vector<8x1xi1> to vector<8x1xi1>
      %243 = vector.broadcast %242 : vector<8x1xi1> to vector<8x128xi1>
      %244 = arith.select %243, %238, %216 : vector<8x128xi1>, vector<8x128xf32>
      %245 = vector.shape_cast %241 : vector<8x1xi1> to vector<8x1xi1>
      %246 = vector.broadcast %245 : vector<8x1xi1> to vector<8x128xi1>
      %247 = arith.select %246, %236, %219 : vector<8x128xi1>, vector<8x128xf32>
      %c0_35 = arith.constant 0 : index
      %c0_36 = arith.constant 0 : index
      %248 = vector.load %arg11[%c0_35, %c0_36] : memref<8x128xf32, #tpu.memory_space<vmem>>, vector<8x128xf32>
      tpu.vector_store %arg11[%c0_35, %c0_36], %244 {strides = array<i32>} : memref<8x128xf32, #tpu.memory_space<vmem>>, vector<8x128xf32>,
      %c0_37 = arith.constant 0 : index
      %c0_38 = arith.constant 0 : index
      %249 = vector.load %arg12[%c0_37, %c0_38] : memref<8x128xf32, #tpu.memory_space<vmem>>, vector<8x128xf32>
      tpu.vector_store %arg12[%c0_37, %c0_38], %247 {strides = array<i32>} : memref<8x128xf32, #tpu.memory_space<vmem>>, vector<8x128xf32>,
    } else {
    }
    %c1_i32 = arith.constant 1 : i32
    %8 = arith.subi %1, %c1_i32 : i32
    %9 = arith.cmpi eq, %arg1, %8 : i32
    %10 = arith.extui %9 : i1 to i32
    %c0_i32_2 = arith.constant 0 : i32
    %11 = arith.cmpi ne, %10, %c0_i32_2 : i32
    scf.if %11 {
      %c0 = arith.constant 0 : index
      %c0_3 = arith.constant 0 : index
      %12 = vector.load %arg11[%c0, %c0_3] : memref<8x128xf32, #tpu.memory_space<vmem>>, vector<8x128xf32>
      %c0_4 = arith.constant 0 : index
      %c0_5 = arith.constant 0 : index
      %13 = vector.load %arg8[%c0_4, %c0_5] : memref<128x128xf32, #tpu.memory_space<vmem>>, vector<128x128xf32>
      %cst = arith.constant dense<0.000000e+00> : vector<8x128xf32>
      %14 = tpu.matmul %12, %13, %cst {dimension_numbers = #tpu.dot_dimension_numbers<[1], [0], [0], [1], [0, 0, 1, 1], [], []>} : vector<8x128xf32>, vector<128x128xf32>, vector<8x128xf32> -> vector<8x128xf32>
      %c0_6 = arith.constant 0 : index
      %c0_7 = arith.constant 0 : index
      %15 = vector.load %arg9[%c0_6, %c0_7] : memref<1x128xf32, #tpu.memory_space<vmem>>, vector<1x128xf32>
      %16 = vector.broadcast %15 : vector<1x128xf32> to vector<8x128xf32>
      %17 = arith.addf %14, %16 : vector<8x128xf32>
      %c0_8 = arith.constant 0 : index
      %c0_9 = arith.constant 0 : index
      %18 = vector.load %arg10[%c0_8, %c0_9] : memref<8x128xf32, #tpu.memory_space<vmem>>, vector<8x128xf32>
      tpu.vector_store %arg10[%c0_8, %c0_9], %17 {strides = array<i32>} : memref<8x128xf32, #tpu.memory_space<vmem>>, vector<8x128xf32>,
    } else {
    }
    return
  }
  func.func @transform_0(%arg0: i32, %arg1: i32, %arg2: memref<1xi32, #tpu.memory_space<smem>>) -> (i32, i32, i32) {
    %0 = arith.index_cast %arg0 : i32 to index
    %1 = memref.load %arg2[%0] : memref<1xi32, #tpu.memory_space<smem>>
    %c1_i32 = arith.constant 1 : i32
    %2 = arith.subi %1, %c1_i32 : i32
    %3 = arith.minsi %arg1, %2 : i32
    %c0_i32 = arith.constant 0 : i32
    %c0_i32_0 = arith.constant 0 : i32
    return %3, %arg0, %c0_i32 : i32, i32, i32
  }
  func.func @transform_1(%arg0: i32, %arg1: i32, %arg2: memref<1xi32, #tpu.memory_space<smem>>) -> (i32, i32) {
    %c0_i32 = arith.constant 0 : i32
    %c0_i32_0 = arith.constant 0 : i32
    return %arg0, %c0_i32 : i32, i32
  }
  func.func @transform_2(%arg0: i32, %arg1: i32, %arg2: memref<1xi32, #tpu.memory_space<smem>>) -> (i32, i32) {
    %c0_i32 = arith.constant 0 : i32
    %c0_i32_0 = arith.constant 0 : i32
    %c0_i32_1 = arith.constant 0 : i32
    return %c0_i32, %c0_i32_0 : i32, i32
  }
  func.func @transform_3(%arg0: i32, %arg1: i32, %arg2: memref<1xi32, #tpu.memory_space<smem>>) -> (i32, i32) {
    %c0_i32 = arith.constant 0 : i32
    %c0_i32_0 = arith.constant 0 : i32
    %c0_i32_1 = arith.constant 0 : i32
    return %c0_i32, %c0_i32_0 : i32, i32
  }
  func.func @transform_4(%arg0: i32, %arg1: i32, %arg2: memref<1xi32, #tpu.memory_space<smem>>) -> (i32, i32) {
    %c0_i32 = arith.constant 0 : i32
    %c0_i32_0 = arith.constant 0 : i32
    %c0_i32_1 = arith.constant 0 : i32
    return %c0_i32, %c0_i32_0 : i32, i32
  }
  func.func @transform_5(%arg0: i32, %arg1: i32, %arg2: memref<1xi32, #tpu.memory_space<smem>>) -> (i32, i32) {
    %c0_i32 = arith.constant 0 : i32
    %c0_i32_0 = arith.constant 0 : i32
    %c0_i32_1 = arith.constant 0 : i32
    return %c0_i32, %c0_i32_0 : i32, i32
  }
  func.func @transform_6(%arg0: i32, %arg1: i32, %arg2: memref<1xi32, #tpu.memory_space<smem>>) -> (i32, i32) {
    %c0_i32 = arith.constant 0 : i32
    %c0_i32_0 = arith.constant 0 : i32
    %c0_i32_1 = arith.constant 0 : i32
    return %c0_i32, %c0_i32_0 : i32, i32
  }
  func.func @transform_7(%arg0: i32, %arg1: i32, %arg2: memref<1xi32, #tpu.memory_space<smem>>) -> (i32, i32) {
    %c0_i32 = arith.constant 0 : i32
    %c0_i32_0 = arith.constant 0 : i32
    return %arg0, %c0_i32 : i32, i32
  }
}

</mosaic_0001>

<llo_original>
// kernel: tpu_custom_call.1
$region0: #{tpu_custom_call.1}
  #allocation0 [shape = 'u32[]', space=smem, size = 0x4, offset = 0x4, fixed_abs, tag = 'smem constant byte address 0x4 - core index']
  #allocation1 [shape = 'u32[144,128]{1,0:T(1,128)}', space=vmem, size = 0x12000, scoped, tag = 'internal scratch']
  #allocation2 [shape = 'f32[8,128]{1,0:T(8,128)}', space=vmem, size = 0x1000, scoped, tag = 'scratch operand']
  #allocation3 [shape = 'f32[8,128]{1,0:T(8,128)}', space=vmem, size = 0x1000, scoped, tag = 'scratch operand']
  #allocation4 [shape = 's32[1]{0}', space=sflag, size = 0x4, scoped, tag = 'scoped memory for tpu_custom_call.1']
  #allocation5 [shape = 's32[1]{0:T(128)S(6)}', space=smem, size = 0x200, scoped, tag = 'prefetched SMEM operand 0']
  %s0 = inlined_call_operand.<no memory space> [shape: s32[1], index: 0, kind: input, shape index: {}]
  %s1 = inlined_call_operand.hbm [shape: f32[8,8,16], index: 1, kind: input, shape index: {}]
  %s2 = inlined_call_operand.vmem [shape: s32[8,1], index: 2, kind: input, shape index: {}]
  %s3 = inlined_call_operand.hbm [shape: f32[16,512], index: 3, kind: input, shape index: {}]
  %s4 = inlined_call_operand.hbm [shape: f32[128,512], index: 4, kind: input, shape index: {}]
  %s5 = inlined_call_operand.vmem [shape: f32[1,512], index: 5, kind: input, shape index: {}]
  %s6 = inlined_call_operand.hbm [shape: f32[128,128], index: 6, kind: input, shape index: {}]
  %s7 = inlined_call_operand.vmem [shape: f32[1,128], index: 7, kind: input, shape index: {}]
  %s8 = inlined_call_operand.hbm [shape: f32[8,128], index: 8, kind: output, shape index: {}]
  %s9 = sld [smem:[#allocation0]]
  $region66: #{tpu_custom_call.1} parent=0
    _
  %s11 = ssub.s32 1, %s9
  %s12 = scalar_select 0, %s11, %s9
  %13 = sst [smem:[#allocation5]] %s0
  $region1: #{tpu_custom_call.1} parent=0
    #allocation6 [shape = 'u8[32768]{0}', space=vmem, size = 0x8000, scoped, tag = 'input window, operand 1, single buffered']
    #allocation7 [shape = 's32[1]{0}', space=sflag, size = 0x4, scoped, tag = 'scoped memory for tpu_custom_call.1']
    #allocation8 [shape = 's32[1]{0}', space=sflag, size = 0x4, scoped, tag = 'scoped memory for tpu_custom_call.1']
    #allocation9 [shape = 'u8[32768]{0}', space=vmem, size = 0x8000, scoped, tag = 'input window, operand 3, single buffered']
    #allocation10 [shape = 's32[1]{0}', space=sflag, size = 0x4, scoped, tag = 'scoped memory for tpu_custom_call.1']
    #allocation11 [shape = 'u8[262144]{0}', space=vmem, size = 0x40000, scoped, tag = 'input window, operand 4, single buffered']
    #allocation12 [shape = 'u8[65536]{0}', space=vmem, size = 0x10000, scoped, tag = 'input window, operand 6, single buffered']
    #allocation13 [shape = 's32[1]{0}', space=sflag, size = 0x4, scoped, tag = 'scoped memory for tpu_custom_call.1']
    #allocation14 [shape = 'u8[4096]{0}', space=vmem, size = 0x1000, scoped, tag = 'output window, operand 0, single buffered']
    %14 = vsyncpa [#allocation7], 0
    %15 = vsyncpa [#allocation10], 0
    %16 = vsyncpa [#allocation13], 0
    %17 = vsyncpa [#allocation8], 0
    // Predicated region
    $region2: #{tpu_custom_call.1} parent=1 // pred_check
      _
    $region3: #{tpu_custom_call.1} parent=1 // pred_check_branch
      %19 = sbr.rel (0) target = $region5
    $region4: #{tpu_custom_call.1} parent=1 // pred_region
      %s20 = sld [smem:[#allocation5]]
      %s21 = ssub.s32 %s20, 1
      %p22 = scmp.lt.s32.totalorder 0, %s21
      %s23 = scalar_select %p22, 0, %s21
      %s24 = smul.u32 8, %s23
      %s26 = ssub.s32 1024, 1024
      %27 = vsyncadd [#allocation7], %s26
      %s28 = smul.addr %s24, 128
      %s29 = scalar_lea.hbm %s1, %s28
      %s30 = sshll.u32 [#allocation6], 4
      %s31 = int_to_ptr.vmem [resolvable:$true] %s30
      %36 = dma.hbm_to_vmem [thread:$0]  %s29, 1024, %s31, [#allocation7], 128, 128, 8
    $region5: #{tpu_custom_call.1} parent=1 // pred_fallthru
      _
    // Predicated region
    $region6: #{tpu_custom_call.1} parent=1 // pred_check
      _
    $region7: #{tpu_custom_call.1} parent=1 // pred_check_branch
      %38 = sbr.rel (0) target = $region9
    $region8: #{tpu_custom_call.1} parent=1 // pred_region
      _
    $region9: #{tpu_custom_call.1} parent=1 // pred_fallthru
      _
    // Predicated region
    $region10: #{tpu_custom_call.1} parent=1 // pred_check
      _
    $region11: #{tpu_custom_call.1} parent=1 // pred_check_branch
      %40 = sbr.rel (0) target = $region13
    $region12: #{tpu_custom_call.1} parent=1 // pred_region
      %s42 = ssub.s32 1024, 1024
      %43 = vsyncadd [#allocation10], %s42
      %s44 = sshll.u32 [#allocation9], 4
      %s45 = int_to_ptr.vmem [resolvable:$true] %s44
      %50 = dma.hbm_to_vmem [thread:$0]  %s3, 1024, %s45, [#allocation10], 512, 512, 32
    $region13: #{tpu_custom_call.1} parent=1 // pred_fallthru
      _
    // Predicated region
    $region14: #{tpu_custom_call.1} parent=1 // pred_check
      _
    $region15: #{tpu_custom_call.1} parent=1 // pred_check_branch
      %52 = sbr.rel (0) target = $region17
    $region16: #{tpu_custom_call.1} parent=1 // pred_region
      %s54 = ssub.s32 8192, 8192
      %55 = vsyncadd [#allocation10], %s54
      %s56 = sshll.u32 [#allocation11], 4
      %s57 = int_to_ptr.vmem [resolvable:$true] %s56
      %62 = dma.hbm_to_vmem [thread:$0]  %s4, 8192, %s57, [#allocation10], 512, 512, 32
    $region17: #{tpu_custom_call.1} parent=1 // pred_fallthru
      _
    // Predicated region
    $region18: #{tpu_custom_call.1} parent=1 // pred_check
      _
    $region19: #{tpu_custom_call.1} parent=1 // pred_check_branch
      %64 = sbr.rel (0) target = $region21
    $region20: #{tpu_custom_call.1} parent=1 // pred_region
      _
    $region21: #{tpu_custom_call.1} parent=1 // pred_fallthru
      _
    // Predicated region
    $region22: #{tpu_custom_call.1} parent=1 // pred_check
      _
    $region23: #{tpu_custom_call.1} parent=1 // pred_check_branch
      %66 = sbr.rel (0) target = $region25
    $region24: #{tpu_custom_call.1} parent=1 // pred_region
      %s68 = ssub.s32 2048, 2048
      %69 = vsyncadd [#allocation13], %s68
      %s70 = sshll.u32 [#allocation12], 4
      %s71 = int_to_ptr.vmem [resolvable:$true] %s70
      %76 = dma.hbm_to_vmem [thread:$0]  %s6, 2048, %s71, [#allocation13], 128, 128, 8
    $region25: #{tpu_custom_call.1} parent=1 // pred_fallthru
      _
    // Predicated region
    $region26: #{tpu_custom_call.1} parent=1 // pred_check
      _
    $region27: #{tpu_custom_call.1} parent=1 // pred_check_branch
      %78 = sbr.rel (0) target = $region29
    $region28: #{tpu_custom_call.1} parent=1 // pred_region
      _
    $region29: #{tpu_custom_call.1} parent=1 // pred_fallthru
      _
    // Predicated region
    $region30: #{tpu_custom_call.1} parent=1 // pred_check
      _
    $region31: #{tpu_custom_call.1} parent=1 // pred_check_branch
      %80 = sbr.rel (0) target = $region33
    $region32: #{tpu_custom_call.1} parent=1 // pred_region
      %81 = dma.done [#allocation7], 1024
    $region33: #{tpu_custom_call.1} parent=1 // pred_fallthru
      _
    // Predicated region
    $region34: #{tpu_custom_call.1} parent=1 // pred_check
      _
    $region35: #{tpu_custom_call.1} parent=1 // pred_check_branch
      %83 = sbr.rel (0) target = $region37
    $region36: #{tpu_custom_call.1} parent=1 // pred_region
      %84 = dma.done [#allocation10], 1024
    $region37: #{tpu_custom_call.1} parent=1 // pred_fallthru
      _
    // Predicated region
    $region38: #{tpu_custom_call.1} parent=1 // pred_check
      _
    $region39: #{tpu_custom_call.1} parent=1 // pred_check_branch
      %86 = sbr.rel (0) target = $region41
    $region40: #{tpu_custom_call.1} parent=1 // pred_region
      %87 = dma.done [#allocation10], 8192
    $region41: #{tpu_custom_call.1} parent=1 // pred_fallthru
      _
    // Predicated region
    $region42: #{tpu_custom_call.1} parent=1 // pred_check
      _
    $region43: #{tpu_custom_call.1} parent=1 // pred_check_branch
      %89 = sbr.rel (0) target = $region45
    $region44: #{tpu_custom_call.1} parent=1 // pred_region
      %90 = dma.done [#allocation13], 2048
    $region45: #{tpu_custom_call.1} parent=1 // pred_fallthru
      _
    %s91 = sld [smem:[#allocation5]]
    %s92 = ssub.s32 %s91, 1
    %p93 = scmp.lt.s32.totalorder 0, %s92
    %s94 = scalar_select %p93, 0, %s92
    %s95 = smul.u32 8, %s94
    %s96 = sld [smem:[#allocation5]]
    %p97 = scmp.eq.s32.totalorder 0, 0
    // Predicated region
    $region46: #{tpu_custom_call.1} parent=1 // pred_check
      %p98 = pneg %p97
    $region47: #{tpu_custom_call.1} parent=1 // pred_check_branch
      %100 = sbr.rel (%p98) target = $region49
    $region48: #{tpu_custom_call.1} parent=1 // pred_region
      %101 = vst [vmem:[#allocation2] sm:$0xff] 0.0
      %102 = vst [vmem:[#allocation3] sm:$0xff] 0.0
    $region49: #{tpu_custom_call.1} parent=1 // pred_fallthru
      _
    %p103 = scmp.lt.s32.totalorder 0, %s96
    // Predicated region
    $region50: #{tpu_custom_call.1} parent=1 // pred_check
      %p104 = pneg %p103
    $region51: #{tpu_custom_call.1} parent=1 // pred_check_branch
      %106 = sbr.rel (%p104) target = $region53
    $region52: #{tpu_custom_call.1} parent=1 // pred_region
      %v107 = vld [vmem:[#allocation11] sm:$0xff]
      %v108 = vld [vmem:[#allocation11 + $0x8] sm:$0xff]
      %v109 = vld [vmem:[#allocation11 + $0x10] sm:$0xff]
      %v110 = vld [vmem:[#allocation11 + $0x18] sm:$0xff]
      %v111 = vld [vmem:[#allocation11 + $0x20] sm:$0xff]
      %v112 = vld [vmem:[#allocation11 + $0x28] sm:$0xff]
      %v113 = vld [vmem:[#allocation11 + $0x30] sm:$0xff]
      %v114 = vld [vmem:[#allocation11 + $0x38] sm:$0xff]
      %v115 = vld [vmem:[#allocation11 + $0x40] sm:$0xff]
      %v116 = vld [vmem:[#allocation11 + $0x48] sm:$0xff]
      %v117 = vld [vmem:[#allocation11 + $0x50] sm:$0xff]
      %v118 = vld [vmem:[#allocation11 + $0x58] sm:$0xff]
      %v119 = vld [vmem:[#allocation11 + $0x60] sm:$0xff]
      %v120 = vld [vmem:[#allocation11 + $0x68] sm:$0xff]
      %v121 = vld [vmem:[#allocation11 + $0x70] sm:$0xff]
      %v122 = vld [vmem:[#allocation11 + $0x78] sm:$0xff]
      %v123 = vld [vmem:[#allocation11 + $0x80] sm:$0xff]
      %v124 = vld [vmem:[#allocation11 + $0x88] sm:$0xff]
      %v125 = vld [vmem:[#allocation11 + $0x90] sm:$0xff]
      %v126 = vld [vmem:[#allocation11 + $0x98] sm:$0xff]
      %v127 = vld [vmem:[#allocation11 + $0xa0] sm:$0xff]
      %v128 = vld [vmem:[#allocation11 + $0xa8] sm:$0xff]
      %v129 = vld [vmem:[#allocation11 + $0xb0] sm:$0xff]
      %v130 = vld [vmem:[#allocation11 + $0xb8] sm:$0xff]
      %v131 = vld [vmem:[#allocation11 + $0xc0] sm:$0xff]
      %v132 = vld [vmem:[#allocation11 + $0xc8] sm:$0xff]
      %v133 = vld [vmem:[#allocation11 + $0xd0] sm:$0xff]
      %v134 = vld [vmem:[#allocation11 + $0xd8] sm:$0xff]
      %v135 = vld [vmem:[#allocation11 + $0xe0] sm:$0xff]
      %v136 = vld [vmem:[#allocation11 + $0xe8] sm:$0xff]
      %v137 = vld [vmem:[#allocation11 + $0xf0] sm:$0xff]
      %v138 = vld [vmem:[#allocation11 + $0xf8] sm:$0xff]
      %v139 = vld [vmem:[#allocation11 + $0x100] sm:$0xff]
      %v140 = vld [vmem:[#allocation11 + $0x108] sm:$0xff]
      %v141 = vld [vmem:[#allocation11 + $0x110] sm:$0xff]
      %v142 = vld [vmem:[#allocation11 + $0x118] sm:$0xff]
      %v143 = vld [vmem:[#allocation11 + $0x120] sm:$0xff]
      %v144 = vld [vmem:[#allocation11 + $0x128] sm:$0xff]
      %v145 = vld [vmem:[#allocation11 + $0x130] sm:$0xff]
      %v146 = vld [vmem:[#allocation11 + $0x138] sm:$0xff]
      %v147 = vld [vmem:[#allocation11 + $0x140] sm:$0xff]
      %v148 = vld [vmem:[#allocation11 + $0x148] sm:$0xff]
      %v149 = vld [vmem:[#allocation11 + $0x150] sm:$0xff]
      %v150 = vld [vmem:[#allocation11 + $0x158] sm:$0xff]
      %v151 = vld [vmem:[#allocation11 + $0x160] sm:$0xff]
      %v152 = vld [vmem:[#allocation11 + $0x168] sm:$0xff]
      %v153 = vld [vmem:[#allocation11 + $0x170] sm:$0xff]
      %v154 = vld [vmem:[#allocation11 + $0x178] sm:$0xff]
      %v155 = vld [vmem:[#allocation11 + $0x180] sm:$0xff]
      %v156 = vld [vmem:[#allocation11 + $0x188] sm:$0xff]
      %v157 = vld [vmem:[#allocation11 + $0x190] sm:$0xff]
      %v158 = vld [vmem:[#allocation11 + $0x198] sm:$0xff]
      %v159 = vld [vmem:[#allocation11 + $0x1a0] sm:$0xff]
      %v160 = vld [vmem:[#allocation11 + $0x1a8] sm:$0xff]
      %v161 = vld [vmem:[#allocation11 + $0x1b0] sm:$0xff]
      %v162 = vld [vmem:[#allocation11 + $0x1b8] sm:$0xff]
      %v163 = vld [vmem:[#allocation11 + $0x1c0] sm:$0xff]
      %v164 = vld [vmem:[#allocation11 + $0x1c8] sm:$0xff]
      %v165 = vld [vmem:[#allocation11 + $0x1d0] sm:$0xff]
      %v166 = vld [vmem:[#allocation11 + $0x1d8] sm:$0xff]
      %v167 = vld [vmem:[#allocation11 + $0x1e0] sm:$0xff]
      %v168 = vld [vmem:[#allocation11 + $0x1e8] sm:$0xff]
      %v169 = vld [vmem:[#allocation11 + $0x1f0] sm:$0xff]
      %v170 = vld [vmem:[#allocation11 + $0x1f8] sm:$0xff]
      %v171 = vld [vmem:[#allocation6] sm:$0xff]
      %v172 = vld [vmem:[#allocation6 + $0x8] sm:$0xff]
      %v173 = vld [vmem:[#allocation6 + $0x10] sm:$0xff]
      %v174 = vld [vmem:[#allocation6 + $0x18] sm:$0xff]
      %v175 = vld [vmem:[#allocation6 + $0x20] sm:$0xff]
      %v176 = vld [vmem:[#allocation6 + $0x28] sm:$0xff]
      %v177 = vld [vmem:[#allocation6 + $0x30] sm:$0xff]
      %v178 = vld [vmem:[#allocation6 + $0x38] sm:$0xff]
      %v179 = vld [vmem:[#allocation9] sm:$0xff]
      %v180 = vld [vmem:[#allocation9 + $0x8] sm:$0xff]
      %v181 = vld [vmem:[#allocation9 + $0x10] sm:$0xff]
      %v182 = vld [vmem:[#allocation9 + $0x18] sm:$0xff]
      %v183 = vld [vmem:[#allocation9 + $0x20] sm:$0xff]
      %v184 = vld [vmem:[#allocation9 + $0x28] sm:$0xff]
      %v185 = vld [vmem:[#allocation9 + $0x30] sm:$0xff]
      %v186 = vld [vmem:[#allocation9 + $0x38] sm:$0xff]
      %v187 = vld [vmem:[%s5] sm:$0xf]
      %v189 = vlaneseq
      %v190 = vshrl.u32 %v189, 7
      %v191 = vsub.s32 0, %v190
      %v192 = vrot.slane %v187, %v191
      %v193 = vlaneseq
      %v194 = vshrl.u32 %v193, 7
      %v195 = vsub.s32 1, %v194
      %v196 = vrot.slane %v187, %v195
      %v197 = vlaneseq
      %v198 = vshrl.u32 %v197, 7
      %v199 = vsub.s32 2, %v198
      %v200 = vrot.slane %v187, %v199
      %v201 = vlaneseq
      %v202 = vshrl.u32 %v201, 7
      %v203 = vsub.s32 3, %v202
      %v204 = vrot.slane %v187, %v203
      %vm209 = vcmask 130048
      %v211 = vsel %vm209, %v171, 0
      %v214 = vsel %vm209, %v172, 0
      %v217 = vsel %vm209, %v173, 0
      %v220 = vsel %vm209, %v174, 0
      %v223 = vsel %vm209, %v175, 0
      %v226 = vsel %vm209, %v176, 0
      %v229 = vsel %vm209, %v177, 0
      %v232 = vsel %vm209, %v178, 0
      %234 = vmatprep.subr.mxu0 %v180
      %235 = vmatpush1.msra.mxu0 %v179
      %236 = vmatprep.subr.mxu0 %v184
      %237 = vmatpush1.msra.mxu0 %v183
      %238 = vmatprep.subr.mxu0 0.0
      %239 = vmatpush1.msra.mxu0 0.0
      %240 = vmatprep.subr.mxu0 0.0
      %241 = vmatpush1.msra.mxu0 0.0
      %242 = vmatprep.subr.mxu0 0.0
      %243 = vmatpush1.msra.mxu0 0.0
      %244 = vmatprep.subr.mxu0 0.0
      %245 = vmatpush1.msra.mxu0 0.0
      %246 = vmatprep.subr.mxu0 0.0
      %247 = vmatpush1.msra.mxu0 0.0
      %248 = vmatprep.subr.mxu0 0.0
      %249 = vmatpush1.msra.mxu0 0.0
      %250 = vmatprep.subr.mxu0 0.0
      %251 = vmatpush1.msra.mxu0 0.0
      %252 = vmatprep.subr.mxu0 0.0
      %253 = vmatpush1.msra.mxu0 0.0
      %254 = vmatprep.subr.mxu0 0.0
      %255 = vmatpush1.msra.mxu0 0.0
      %256 = vmatprep.subr.mxu0 0.0
      %257 = vmatpush1.msra.mxu0 0.0
      %258 = vmatprep.subr.mxu0 0.0
      %259 = vmatpush1.msra.mxu0 0.0
      %260 = vmatprep.subr.mxu0 0.0
      %261 = vmatpush1.msra.mxu0 0.0
      %262 = vmatprep.subr.mxu0 0.0
      %263 = vmatpush1.msra.mxu0 0.0
      %264 = vmatprep.subr.mxu0 0.0
      %265 = vmatpush1.msra.mxu0 0.0
      %266 = vmatprep.subr.mxu0 0.0
      %267 = vmatpush1.msra.mxu0 0.0
      %268 = vmatprep.subr.mxu0 0.0
      %269 = vmatpush1.msra.mxu0 0.0
      %270 = vmatprep.subr.mxu0 0.0
      %271 = vmatpush1.msra.mxu0 0.0
      %272 = vmatprep.subr.mxu0 0.0
      %273 = vmatpush1.msra.mxu0 0.0
      %274 = vmatprep.subr.mxu0 0.0
      %275 = vmatpush1.msra.mxu0 0.0
      %276 = vmatprep.subr.mxu0 0.0
      %277 = vmatpush1.msra.mxu0 0.0
      %278 = vmatprep.subr.mxu0 0.0
      %279 = vmatpush1.msra.mxu0 0.0
      %280 = vmatprep.subr.mxu0 0.0
      %281 = vmatpush1.msra.mxu0 0.0
      %282 = vmatprep.subr.mxu0 0.0
      %283 = vmatpush1.msra.mxu0 0.0
      %284 = vmatprep.subr.mxu0 0.0
      %285 = vmatpush1.msra.mxu0 0.0
      %286 = vmatprep.subr.mxu0 0.0
      %287 = vmatpush1.msra.mxu0 0.0
      %288 = vmatprep.subr.mxu0 0.0
      %289 = vmatpush1.msra.mxu0 0.0
      %290 = vmatprep.subr.mxu0 0.0
      %291 = vmatpush1.msra.mxu0 0.0
      %292 = vmatprep.subr.mxu0 0.0
      %293 = vmatpush1.msra.mxu0 0.0
      %294 = vmatprep.subr.mxu0 0.0
      %295 = vmatpush1.msra.mxu0 0.0
      %296 = vmatprep.subr.mxu0 0.0
      %297 = vmatpush1.msra.mxu0 0.0
      %298 = vmatprep.mubr.f32.mxu0 0.0
      %299 = vmatmul.mubr.f32.gmra.mrb[0].mxu0 %v211
      %v300 = vpop.f32.mrb[0].mxu0
      %v301 = vadd.f32 %v192, %v300
      %v302 = vpop.f32.mrb[0].mxu0
      %v303 = vadd.f32 %v196, %v302
      %304 = vmatprep.mubr.f32.mxu0 0.0
      %305 = vmatmul.mubr.f32.gmra.mrb[0].mxu0 %v214
      %v306 = vpop.f32.mrb[0].mxu0
      %v307 = vadd.f32 %v192, %v306
      %v308 = vpop.f32.mrb[0].mxu0
      %v309 = vadd.f32 %v196, %v308
      %310 = vmatprep.mubr.f32.mxu0 0.0
      %311 = vmatmul.mubr.f32.gmra.mrb[0].mxu0 %v217
      %v312 = vpop.f32.mrb[0].mxu0
      %v313 = vadd.f32 %v192, %v312
      %v314 = vpop.f32.mrb[0].mxu0
      %v315 = vadd.f32 %v196, %v314
      %316 = vmatprep.mubr.f32.mxu0 0.0
      %317 = vmatmul.mubr.f32.gmra.mrb[0].mxu0 %v220
      %v318 = vpop.f32.mrb[0].mxu0
      %v319 = vadd.f32 %v192, %v318
      %v320 = vpop.f32.mrb[0].mxu0
      %v321 = vadd.f32 %v196, %v320
      %322 = vmatprep.mubr.f32.mxu0 0.0
      %323 = vmatmul.mubr.f32.gmra.mrb[0].mxu0 %v223
      %v324 = vpop.f32.mrb[0].mxu0
      %v325 = vadd.f32 %v192, %v324
      %v326 = vpop.f32.mrb[0].mxu0
      %v327 = vadd.f32 %v196, %v326
      %328 = vmatprep.mubr.f32.mxu0 0.0
      %329 = vmatmul.mubr.f32.gmra.mrb[0].mxu0 %v226
      %v330 = vpop.f32.mrb[0].mxu0
      %v331 = vadd.f32 %v192, %v330
      %v332 = vpop.f32.mrb[0].mxu0
      %v333 = vadd.f32 %v196, %v332
      %334 = vmatprep.mubr.f32.mxu0 0.0
      %335 = vmatmul.mubr.f32.gmra.mrb[0].mxu0 %v229
      %v336 = vpop.f32.mrb[0].mxu0
      %v337 = vadd.f32 %v192, %v336
      %v338 = vpop.f32.mrb[0].mxu0
      %v339 = vadd.f32 %v196, %v338
      %340 = vmatprep.mubr.f32.mxu0 0.0
      %341 = vmatmul.mubr.f32.gmra.mrb[0].mxu0 %v232
      %v342 = vpop.f32.mrb[0].mxu0
      %v343 = vadd.f32 %v192, %v342
      %v344 = vpop.f32.mrb[0].mxu0
      %v345 = vadd.f32 %v196, %v344
      %346 = vdwg.mxu0
      %347 = vmatprep.subr.mxu0 %v182
      %348 = vmatpush1.msra.mxu0 %v181
      %349 = vmatprep.subr.mxu0 %v186
      %350 = vmatpush1.msra.mxu0 %v185
      %351 = vmatprep.subr.mxu0 0.0
      %352 = vmatpush1.msra.mxu0 0.0
      %353 = vmatprep.subr.mxu0 0.0
      %354 = vmatpush1.msra.mxu0 0.0
      %355 = vmatprep.subr.mxu0 0.0
      %356 = vmatpush1.msra.mxu0 0.0
      %357 = vmatprep.subr.mxu0 0.0
      %358 = vmatpush1.msra.mxu0 0.0
      %359 = vmatprep.subr.mxu0 0.0
      %360 = vmatpush1.msra.mxu0 0.0
      %361 = vmatprep.subr.mxu0 0.0
      %362 = vmatpush1.msra.mxu0 0.0
      %363 = vmatprep.subr.mxu0 0.0
      %364 = vmatpush1.msra.mxu0 0.0
      %365 = vmatprep.subr.mxu0 0.0
      %366 = vmatpush1.msra.mxu0 0.0
      %367 = vmatprep.subr.mxu0 0.0
      %368 = vmatpush1.msra.mxu0 0.0
      %369 = vmatprep.subr.mxu0 0.0
      %370 = vmatpush1.msra.mxu0 0.0
      %371 = vmatprep.subr.mxu0 0.0
      %372 = vmatpush1.msra.mxu0 0.0
      %373 = vmatprep.subr.mxu0 0.0
      %374 = vmatpush1.msra.mxu0 0.0
      %375 = vmatprep.subr.mxu0 0.0
      %376 = vmatpush1.msra.mxu0 0.0
      %377 = vmatprep.subr.mxu0 0.0
      %378 = vmatpush1.msra.mxu0 0.0
      %379 = vmatprep.subr.mxu0 0.0
      %380 = vmatpush1.msra.mxu0 0.0
      %381 = vmatprep.subr.mxu0 0.0
      %382 = vmatpush1.msra.mxu0 0.0
      %383 = vmatprep.subr.mxu0 0.0
      %384 = vmatpush1.msra.mxu0 0.0
      %385 = vmatprep.subr.mxu0 0.0
      %386 = vmatpush1.msra.mxu0 0.0
      %387 = vmatprep.subr.mxu0 0.0
      %388 = vmatpush1.msra.mxu0 0.0
      %389 = vmatprep.subr.mxu0 0.0
      %390 = vmatpush1.msra.mxu0 0.0
      %391 = vmatprep.subr.mxu0 0.0
      %392 = vmatpush1.msra.mxu0 0.0
      %393 = vmatprep.subr.mxu0 0.0
      %394 = vmatpush1.msra.mxu0 0.0
      %395 = vmatprep.subr.mxu0 0.0
      %396 = vmatpush1.msra.mxu0 0.0
      %397 = vmatprep.subr.mxu0 0.0
      %398 = vmatpush1.msra.mxu0 0.0
      %399 = vmatprep.subr.mxu0 0.0
      %400 = vmatpush1.msra.mxu0 0.0
      %401 = vmatprep.subr.mxu0 0.0
      %402 = vmatpush1.msra.mxu0 0.0
      %403 = vmatprep.subr.mxu0 0.0
      %404 = vmatpush1.msra.mxu0 0.0
      %405 = vmatprep.subr.mxu0 0.0
      %406 = vmatpush1.msra.mxu0 0.0
      %407 = vmatprep.subr.mxu0 0.0
      %408 = vmatpush1.msra.mxu0 0.0
      %409 = vmatprep.subr.mxu0 0.0
      %410 = vmatpush1.msra.mxu0 0.0
      %411 = vmatprep.mubr.f32.mxu0 0.0
      %412 = vmatmul.mubr.f32.gmra.mrb[0].mxu0 %v211
      %v413 = vpop.f32.mrb[0].mxu0
      %v414 = vadd.f32 %v200, %v413
      %v415 = vpop.f32.mrb[0].mxu0
      %v416 = vadd.f32 %v204, %v415
      %417 = vmatprep.mubr.f32.mxu0 0.0
      %418 = vmatmul.mubr.f32.gmra.mrb[0].mxu0 %v214
      %v419 = vpop.f32.mrb[0].mxu0
      %v420 = vadd.f32 %v200, %v419
      %v421 = vpop.f32.mrb[0].mxu0
      %v422 = vadd.f32 %v204, %v421
      %423 = vmatprep.mubr.f32.mxu0 0.0
      %424 = vmatmul.mubr.f32.gmra.mrb[0].mxu0 %v217
      %v425 = vpop.f32.mrb[0].mxu0
      %v426 = vadd.f32 %v200, %v425
      %v427 = vpop.f32.mrb[0].mxu0
      %v428 = vadd.f32 %v204, %v427
      %429 = vmatprep.mubr.f32.mxu0 0.0
      %430 = vmatmul.mubr.f32.gmra.mrb[0].mxu0 %v220
      %v431 = vpop.f32.mrb[0].mxu0
      %v432 = vadd.f32 %v200, %v431
      %v433 = vpop.f32.mrb[0].mxu0
      %v434 = vadd.f32 %v204, %v433
      %435 = vmatprep.mubr.f32.mxu0 0.0
      %436 = vmatmul.mubr.f32.gmra.mrb[0].mxu0 %v223
      %v437 = vpop.f32.mrb[0].mxu0
      %v438 = vadd.f32 %v200, %v437
      %v439 = vpop.f32.mrb[0].mxu0
      %v440 = vadd.f32 %v204, %v439
      %441 = vmatprep.mubr.f32.mxu0 0.0
      %442 = vmatmul.mubr.f32.gmra.mrb[0].mxu0 %v226
      %v443 = vpop.f32.mrb[0].mxu0
      %v444 = vadd.f32 %v200, %v443
      %v445 = vpop.f32.mrb[0].mxu0
      %v446 = vadd.f32 %v204, %v445
      %447 = vmatprep.mubr.f32.mxu0 0.0
      %448 = vmatmul.mubr.f32.gmra.mrb[0].mxu0 %v229
      %v449 = vpop.f32.mrb[0].mxu0
      %v450 = vadd.f32 %v200, %v449
      %v451 = vpop.f32.mrb[0].mxu0
      %v452 = vadd.f32 %v204, %v451
      %453 = vmatprep.mubr.f32.mxu0 0.0
      %454 = vmatmul.mubr.f32.gmra.mrb[0].mxu0 %v232
      %v455 = vpop.f32.mrb[0].mxu0
      %v456 = vadd.f32 %v200, %v455
      %v457 = vpop.f32.mrb[0].mxu0
      %v458 = vadd.f32 %v204, %v457
      %459 = vdwg.mxu0
      %v460 = vld [vmem:[%s2] sm:$0xff]
      %s461 = smul.u32 0, 8
      %v462 = vld [vmem:[#allocation2] sm:$0xff]
      %v463 = vld [vmem:[#allocation3] sm:$0xff]
      %464 = vmatprep.subr.mxu0 %v108
      %465 = vmatpush1.msra.mxu0 %v107
      %466 = vmatprep.subr.mxu0 %v112
      %467 = vmatpush1.msra.mxu0 %v111
      %468 = vmatprep.subr.mxu0 %v116
      %469 = vmatpush1.msra.mxu0 %v115
      %470 = vmatprep.subr.mxu0 %v120
      %471 = vmatpush1.msra.mxu0 %v119
      %472 = vmatprep.subr.mxu0 %v124
      %473 = vmatpush1.msra.mxu0 %v123
      %474 = vmatprep.subr.mxu0 %v128
      %475 = vmatpush1.msra.mxu0 %v127
      %476 = vmatprep.subr.mxu0 %v132
      %477 = vmatpush1.msra.mxu0 %v131
      %478 = vmatprep.subr.mxu0 %v136
      %479 = vmatpush1.msra.mxu0 %v135
      %480 = vmatprep.subr.mxu0 %v140
      %481 = vmatpush1.msra.mxu0 %v139
      %482 = vmatprep.subr.mxu0 %v144
      %483 = vmatpush1.msra.mxu0 %v143
      %484 = vmatprep.subr.mxu0 %v148
      %485 = vmatpush1.msra.mxu0 %v147
      %486 = vmatprep.subr.mxu0 %v152
      %487 = vmatpush1.msra.mxu0 %v151
      %488 = vmatprep.subr.mxu0 %v156
      %489 = vmatpush1.msra.mxu0 %v155
      %490 = vmatprep.subr.mxu0 %v160
      %491 = vmatpush1.msra.mxu0 %v159
      %492 = vmatprep.subr.mxu0 %v164
      %493 = vmatpush1.msra.mxu0 %v163
      %494 = vmatprep.subr.mxu0 %v168
      %495 = vmatpush1.msra.mxu0 %v167
      %496 = vmatprep.subr.mxu0 0.0
      %497 = vmatpush1.msra.mxu0 0.0
      %498 = vmatprep.subr.mxu0 0.0
      %499 = vmatpush1.msra.mxu0 0.0
      %500 = vmatprep.subr.mxu0 0.0
      %501 = vmatpush1.msra.mxu0 0.0
      %502 = vmatprep.subr.mxu0 0.0
      %503 = vmatpush1.msra.mxu0 0.0
      %504 = vmatprep.subr.mxu0 0.0
      %505 = vmatpush1.msra.mxu0 0.0
      %506 = vmatprep.subr.mxu0 0.0
      %507 = vmatpush1.msra.mxu0 0.0
      %508 = vmatprep.subr.mxu0 0.0
      %509 = vmatpush1.msra.mxu0 0.0
      %510 = vmatprep.subr.mxu0 0.0
      %511 = vmatpush1.msra.mxu0 0.0
      %512 = vmatprep.subr.mxu0 0.0
      %513 = vmatpush1.msra.mxu0 0.0
      %514 = vmatprep.subr.mxu0 0.0
      %515 = vmatpush1.msra.mxu0 0.0
      %516 = vmatprep.subr.mxu0 0.0
      %517 = vmatpush1.msra.mxu0 0.0
      %518 = vmatprep.subr.mxu0 0.0
      %519 = vmatpush1.msra.mxu0 0.0
      %520 = vmatprep.subr.mxu0 0.0
      %521 = vmatpush1.msra.mxu0 0.0
      %522 = vmatprep.subr.mxu0 0.0
      %523 = vmatpush1.msra.mxu0 0.0
      %524 = vmatprep.subr.mxu0 0.0
      %525 = vmatpush1.msra.mxu0 0.0
      %526 = vmatprep.subr.mxu0 0.0
      %527 = vmatpush1.msra.mxu0 0.0
      %528 = vmatprep.mubr.f32.mxu0 0.0
      %529 = vmatmul.mubr.f32.gmra.mrb[0].mxu0 %v462
      %v530 = vpop.f32.mrb[0].mxu0
      %v531 = vadd.f32 0.0, %v530
      %v532 = vpop.f32.mrb[0].mxu0
      %v533 = vadd.f32 0.0, %v532
      %534 = vdwg.mxu0
      %535 = vmatprep.subr.mxu0 %v110
      %536 = vmatpush1.msra.mxu0 %v109
      %537 = vmatprep.subr.mxu0 %v114
      %538 = vmatpush1.msra.mxu0 %v113
      %539 = vmatprep.subr.mxu0 %v118
      %540 = vmatpush1.msra.mxu0 %v117
      %541 = vmatprep.subr.mxu0 %v122
      %542 = vmatpush1.msra.mxu0 %v121
      %543 = vmatprep.subr.mxu0 %v126
      %544 = vmatpush1.msra.mxu0 %v125
      %545 = vmatprep.subr.mxu0 %v130
      %546 = vmatpush1.msra.mxu0 %v129
      %547 = vmatprep.subr.mxu0 %v134
      %548 = vmatpush1.msra.mxu0 %v133
      %549 = vmatprep.subr.mxu0 %v138
      %550 = vmatpush1.msra.mxu0 %v137
      %551 = vmatprep.subr.mxu0 %v142
      %552 = vmatpush1.msra.mxu0 %v141
      %553 = vmatprep.subr.mxu0 %v146
      %554 = vmatpush1.msra.mxu0 %v145
      %555 = vmatprep.subr.mxu0 %v150
      %556 = vmatpush1.msra.mxu0 %v149
      %557 = vmatprep.subr.mxu0 %v154
      %558 = vmatpush1.msra.mxu0 %v153
      %559 = vmatprep.subr.mxu0 %v158
      %560 = vmatpush1.msra.mxu0 %v157
      %561 = vmatprep.subr.mxu0 %v162
      %562 = vmatpush1.msra.mxu0 %v161
      %563 = vmatprep.subr.mxu0 %v166
      %564 = vmatpush1.msra.mxu0 %v165
      %565 = vmatprep.subr.mxu0 %v170
      %566 = vmatpush1.msra.mxu0 %v169
      %567 = vmatprep.subr.mxu0 0.0
      %568 = vmatpush1.msra.mxu0 0.0
      %569 = vmatprep.subr.mxu0 0.0
      %570 = vmatpush1.msra.mxu0 0.0
      %571 = vmatprep.subr.mxu0 0.0
      %572 = vmatpush1.msra.mxu0 0.0
      %573 = vmatprep.subr.mxu0 0.0
      %574 = vmatpush1.msra.mxu0 0.0
      %575 = vmatprep.subr.mxu0 0.0
      %576 = vmatpush1.msra.mxu0 0.0
      %577 = vmatprep.subr.mxu0 0.0
      %578 = vmatpush1.msra.mxu0 0.0
      %579 = vmatprep.subr.mxu0 0.0
      %580 = vmatpush1.msra.mxu0 0.0
      %581 = vmatprep.subr.mxu0 0.0
      %582 = vmatpush1.msra.mxu0 0.0
      %583 = vmatprep.subr.mxu0 0.0
      %584 = vmatpush1.msra.mxu0 0.0
      %585 = vmatprep.subr.mxu0 0.0
      %586 = vmatpush1.msra.mxu0 0.0
      %587 = vmatprep.subr.mxu0 0.0
      %588 = vmatpush1.msra.mxu0 0.0
      %589 = vmatprep.subr.mxu0 0.0
      %590 = vmatpush1.msra.mxu0 0.0
      %591 = vmatprep.subr.mxu0 0.0
      %592 = vmatpush1.msra.mxu0 0.0
      %593 = vmatprep.subr.mxu0 0.0
      %594 = vmatpush1.msra.mxu0 0.0
      %595 = vmatprep.subr.mxu0 0.0
      %596 = vmatpush1.msra.mxu0 0.0
      %597 = vmatprep.subr.mxu0 0.0
      %598 = vmatpush1.msra.mxu0 0.0
      %599 = vmatprep.mubr.f32.mxu0 0.0
      %600 = vmatmul.mubr.f32.gmra.mrb[0].mxu0 %v462
      %v601 = vpop.f32.mrb[0].mxu0
      %v602 = vadd.f32 0.0, %v601
      %v603 = vpop.f32.mrb[0].mxu0
      %v604 = vadd.f32 0.0, %v603
      %605 = vdwg.mxu0
      %v606 = vadd.f32 %v301, %v531
      %v607 = vadd.f32 %v303, %v533
      %v608 = vadd.f32 %v414, %v602
      %v609 = vadd.f32 %v416, %v604
      %v610 = vxor.u32 %v606, 2147483648
      %v611 = vxor.u32 %v607, 2147483648
      %v612 = vxor.u32 %v608, 2147483648
      %v613 = vmul.f32 %v610, 1.442695
      %v614 = vpow.pop %v613
      %v615 = vmul.f32 %v611, 1.442695
      %v616 = vpow.pop %v615
      %v617 = vmul.f32 %v612, 1.442695
      %v618 = vpow.pop %v617
      %v619 = vadd.f32 %v614, 1.0
      %v620 = vadd.f32 %v616, 1.0
      %v621 = vadd.f32 %v618, 1.0
      %v622 = vrcp.pop %v619
      %v623 = vmul.f32 1.0, %v622
      %v624 = vrcp.pop %v620
      %v625 = vmul.f32 1.0, %v624
      %v626 = vrcp.pop %v621
      %v627 = vmul.f32 1.0, %v626
      %v628 = vtanh.pop %v609
      %v629 = vmul.f32 %v625, %v463
      %v630 = vmul.f32 %v623, %v628
      %v631 = vadd.f32 %v629, %v630
      %v632 = vtanh.pop %v631
      %v633 = vmul.f32 %v627, %v632
      %v634 = vstv %s461
      %vm635 = vcmp.lt.s32.totalorder %v634, %v460
      %v636 = vsel %vm635, 1, 0
      %637 = vset.pattern.permute.xlu0 0
      %638 = vperm.xlu0 %637, %v636
      %v639 = vpop.permute.xlu0 %638
      %vm640 = vcmp.eq.s32.totalorder %v639, 1
      %v641 = vsel %vm640, %v633, %v462
      %v642 = vsel %vm640, %v631, %v463
      %643 = vmatprep.subr.mxu0 %v108
      %644 = vmatpush1.msra.mxu0 %v107
      %645 = vmatprep.subr.mxu0 %v112
      %646 = vmatpush1.msra.mxu0 %v111
      %647 = vmatprep.subr.mxu0 %v116
      %648 = vmatpush1.msra.mxu0 %v115
      %649 = vmatprep.subr.mxu0 %v120
      %650 = vmatpush1.msra.mxu0 %v119
      %651 = vmatprep.subr.mxu0 %v124
      %652 = vmatpush1.msra.mxu0 %v123
      %653 = vmatprep.subr.mxu0 %v128
      %654 = vmatpush1.msra.mxu0 %v127
      %655 = vmatprep.subr.mxu0 %v132
      %656 = vmatpush1.msra.mxu0 %v131
      %657 = vmatprep.subr.mxu0 %v136
      %658 = vmatpush1.msra.mxu0 %v135
      %659 = vmatprep.subr.mxu0 %v140
      %660 = vmatpush1.msra.mxu0 %v139
      %661 = vmatprep.subr.mxu0 %v144
      %662 = vmatpush1.msra.mxu0 %v143
      %663 = vmatprep.subr.mxu0 %v148
      %664 = vmatpush1.msra.mxu0 %v147
      %665 = vmatprep.subr.mxu0 %v152
      %666 = vmatpush1.msra.mxu0 %v151
      %667 = vmatprep.subr.mxu0 %v156
      %668 = vmatpush1.msra.mxu0 %v155
      %669 = vmatprep.subr.mxu0 %v160
      %670 = vmatpush1.msra.mxu0 %v159
      %671 = vmatprep.subr.mxu0 %v164
      %672 = vmatpush1.msra.mxu0 %v163
      %673 = vmatprep.subr.mxu0 %v168
      %674 = vmatpush1.msra.mxu0 %v167
      %675 = vmatprep.subr.mxu0 0.0
      %676 = vmatpush1.msra.mxu0 0.0
      %677 = vmatprep.subr.mxu0 0.0
      %678 = vmatpush1.msra.mxu0 0.0
      %679 = vmatprep.subr.mxu0 0.0
      %680 = vmatpush1.msra.mxu0 0.0
      %681 = vmatprep.subr.mxu0 0.0
      %682 = vmatpush1.msra.mxu0 0.0
      %683 = vmatprep.subr.mxu0 0.0
      %684 = vmatpush1.msra.mxu0 0.0
      %685 = vmatprep.subr.mxu0 0.0
      %686 = vmatpush1.msra.mxu0 0.0
      %687 = vmatprep.subr.mxu0 0.0
      %688 = vmatpush1.msra.mxu0 0.0
      %689 = vmatprep.subr.mxu0 0.0
      %690 = vmatpush1.msra.mxu0 0.0
      %691 = vmatprep.subr.mxu0 0.0
      %692 = vmatpush1.msra.mxu0 0.0
      %693 = vmatprep.subr.mxu0 0.0
      %694 = vmatpush1.msra.mxu0 0.0
      %695 = vmatprep.subr.mxu0 0.0
      %696 = vmatpush1.msra.mxu0 0.0
      %697 = vmatprep.subr.mxu0 0.0
      %698 = vmatpush1.msra.mxu0 0.0
      %699 = vmatprep.subr.mxu0 0.0
      %700 = vmatpush1.msra.mxu0 0.0
      %701 = vmatprep.subr.mxu0 0.0
      %702 = vmatpush1.msra.mxu0 0.0
      %703 = vmatprep.subr.mxu0 0.0
      %704 = vmatpush1.msra.mxu0 0.0
      %705 = vmatprep.subr.mxu0 0.0
      %706 = vmatpush1.msra.mxu0 0.0
      %707 = vmatprep.mubr.f32.mxu0 0.0
      %708 = vmatmul.mubr.f32.gmra.mrb[0].mxu0 %v641
      %v709 = vpop.f32.mrb[0].mxu0
      %v710 = vadd.f32 0.0, %v709
      %v711 = vpop.f32.mrb[0].mxu0
      %v712 = vadd.f32 0.0, %v711
      %713 = vdwg.mxu0
      %714 = vmatprep.subr.mxu0 %v110
      %715 = vmatpush1.msra.mxu0 %v109
      %716 = vmatprep.subr.mxu0 %v114
      %717 = vmatpush1.msra.mxu0 %v113
      %718 = vmatprep.subr.mxu0 %v118
      %719 = vmatpush1.msra.mxu0 %v117
      %720 = vmatprep.subr.mxu0 %v122
      %721 = vmatpush1.msra.mxu0 %v121
      %722 = vmatprep.subr.mxu0 %v126
      %723 = vmatpush1.msra.mxu0 %v125
      %724 = vmatprep.subr.mxu0 %v130
      %725 = vmatpush1.msra.mxu0 %v129
      %726 = vmatprep.subr.mxu0 %v134
      %727 = vmatpush1.msra.mxu0 %v133
      %728 = vmatprep.subr.mxu0 %v138
      %729 = vmatpush1.msra.mxu0 %v137
      %730 = vmatprep.subr.mxu0 %v142
      %731 = vmatpush1.msra.mxu0 %v141
      %732 = vmatprep.subr.mxu0 %v146
      %733 = vmatpush1.msra.mxu0 %v145
      %734 = vmatprep.subr.mxu0 %v150
      %735 = vmatpush1.msra.mxu0 %v149
      %736 = vmatprep.subr.mxu0 %v154
      %737 = vmatpush1.msra.mxu0 %v153
      %738 = vmatprep.subr.mxu0 %v158
      %739 = vmatpush1.msra.mxu0 %v157
      %740 = vmatprep.subr.mxu0 %v162
      %741 = vmatpush1.msra.mxu0 %v161
      %742 = vmatprep.subr.mxu0 %v166
      %743 = vmatpush1.msra.mxu0 %v165
      %744 = vmatprep.subr.mxu0 %v170
      %745 = vmatpush1.msra.mxu0 %v169
      %746 = vmatprep.subr.mxu0 0.0
      %747 = vmatpush1.msra.mxu0 0.0
      %748 = vmatprep.subr.mxu0 0.0
      %749 = vmatpush1.msra.mxu0 0.0
      %750 = vmatprep.subr.mxu0 0.0
      %751 = vmatpush1.msra.mxu0 0.0
      %752 = vmatprep.subr.mxu0 0.0
      %753 = vmatpush1.msra.mxu0 0.0
      %754 = vmatprep.subr.mxu0 0.0
      %755 = vmatpush1.msra.mxu0 0.0
      %756 = vmatprep.subr.mxu0 0.0
      %757 = vmatpush1.msra.mxu0 0.0
      %758 = vmatprep.subr.mxu0 0.0
      %759 = vmatpush1.msra.mxu0 0.0
      %760 = vmatprep.subr.mxu0 0.0
      %761 = vmatpush1.msra.mxu0 0.0
      %762 = vmatprep.subr.mxu0 0.0
      %763 = vmatpush1.msra.mxu0 0.0
      %764 = vmatprep.subr.mxu0 0.0
      %765 = vmatpush1.msra.mxu0 0.0
      %766 = vmatprep.subr.mxu0 0.0
      %767 = vmatpush1.msra.mxu0 0.0
      %768 = vmatprep.subr.mxu0 0.0
      %769 = vmatpush1.msra.mxu0 0.0
      %770 = vmatprep.subr.mxu0 0.0
      %771 = vmatpush1.msra.mxu0 0.0
      %772 = vmatprep.subr.mxu0 0.0
      %773 = vmatpush1.msra.mxu0 0.0
      %774 = vmatprep.subr.mxu0 0.0
      %775 = vmatpush1.msra.mxu0 0.0
      %776 = vmatprep.subr.mxu0 0.0
      %777 = vmatpush1.msra.mxu0 0.0
      %778 = vmatprep.mubr.f32.mxu0 0.0
      %779 = vmatmul.mubr.f32.gmra.mrb[0].mxu0 %v641
      %v780 = vpop.f32.mrb[0].mxu0
      %v781 = vadd.f32 0.0, %v780
      %v782 = vpop.f32.mrb[0].mxu0
      %v783 = vadd.f32 0.0, %v782
      %784 = vdwg.mxu0
      %v785 = vadd.f32 %v307, %v710
      %v786 = vadd.f32 %v309, %v712
      %v787 = vadd.f32 %v420, %v781
      %v788 = vadd.f32 %v422, %v783
      %v789 = vxor.u32 %v785, 2147483648
      %v790 = vxor.u32 %v786, 2147483648
      %v791 = vxor.u32 %v787, 2147483648
      %v792 = vmul.f32 %v789, 1.442695
      %v793 = vpow.pop %v792
      %v794 = vmul.f32 %v790, 1.442695
      %v795 = vpow.pop %v794
      %v796 = vmul.f32 %v791, 1.442695
      %v797 = vpow.pop %v796
      %v798 = vadd.f32 %v793, 1.0
      %v799 = vadd.f32 %v795, 1.0
      %v800 = vadd.f32 %v797, 1.0
      %v801 = vrcp.pop %v798
      %v802 = vmul.f32 1.0, %v801
      %v803 = vrcp.pop %v799
      %v804 = vmul.f32 1.0, %v803
      %v805 = vrcp.pop %v800
      %v806 = vmul.f32 1.0, %v805
      %v807 = vtanh.pop %v788
      %v808 = vmul.f32 %v804, %v642
      %v809 = vmul.f32 %v802, %v807
      %v810 = vadd.f32 %v808, %v809
      %v811 = vtanh.pop %v810
      %v812 = vmul.f32 %v806, %v811
      %s813 = sadd.s32 %s461, 1
      %v814 = vstv %s813
      %vm815 = vcmp.lt.s32.totalorder %v814, %v460
      %v816 = vsel %vm815, 1, 0
      %817 = vset.pattern.permute.xlu0 0
      %818 = vperm.xlu0 %817, %v816
      %v819 = vpop.permute.xlu0 %818
      %vm820 = vcmp.eq.s32.totalorder %v819, 1
      %v821 = vsel %vm820, %v812, %v641
      %v822 = vsel %vm820, %v810, %v642
      %823 = vmatprep.subr.mxu0 %v108
      %824 = vmatpush1.msra.mxu0 %v107
      %825 = vmatprep.subr.mxu0 %v112
      %826 = vmatpush1.msra.mxu0 %v111
      %827 = vmatprep.subr.mxu0 %v116
      %828 = vmatpush1.msra.mxu0 %v115
      %829 = vmatprep.subr.mxu0 %v120
      %830 = vmatpush1.msra.mxu0 %v119
      %831 = vmatprep.subr.mxu0 %v124
      %832 = vmatpush1.msra.mxu0 %v123
      %833 = vmatprep.subr.mxu0 %v128
      %834 = vmatpush1.msra.mxu0 %v127
      %835 = vmatprep.subr.mxu0 %v132
      %836 = vmatpush1.msra.mxu0 %v131
      %837 = vmatprep.subr.mxu0 %v136
      %838 = vmatpush1.msra.mxu0 %v135
      %839 = vmatprep.subr.mxu0 %v140
      %840 = vmatpush1.msra.mxu0 %v139
      %841 = vmatprep.subr.mxu0 %v144
      %842 = vmatpush1.msra.mxu0 %v143
      %843 = vmatprep.subr.mxu0 %v148
      %844 = vmatpush1.msra.mxu0 %v147
      %845 = vmatprep.subr.mxu0 %v152
      %846 = vmatpush1.msra.mxu0 %v151
      %847 = vmatprep.subr.mxu0 %v156
      %848 = vmatpush1.msra.mxu0 %v155
      %849 = vmatprep.subr.mxu0 %v160
      %850 = vmatpush1.msra.mxu0 %v159
      %851 = vmatprep.subr.mxu0 %v164
      %852 = vmatpush1.msra.mxu0 %v163
      %853 = vmatprep.subr.mxu0 %v168
      %854 = vmatpush1.msra.mxu0 %v167
      %855 = vmatprep.subr.mxu0 0.0
      %856 = vmatpush1.msra.mxu0 0.0
      %857 = vmatprep.subr.mxu0 0.0
      %858 = vmatpush1.msra.mxu0 0.0
      %859 = vmatprep.subr.mxu0 0.0
      %860 = vmatpush1.msra.mxu0 0.0
      %861 = vmatprep.subr.mxu0 0.0
      %862 = vmatpush1.msra.mxu0 0.0
      %863 = vmatprep.subr.mxu0 0.0
      %864 = vmatpush1.msra.mxu0 0.0
      %865 = vmatprep.subr.mxu0 0.0
      %866 = vmatpush1.msra.mxu0 0.0
      %867 = vmatprep.subr.mxu0 0.0
      %868 = vmatpush1.msra.mxu0 0.0
      %869 = vmatprep.subr.mxu0 0.0
      %870 = vmatpush1.msra.mxu0 0.0
      %871 = vmatprep.subr.mxu0 0.0
      %872 = vmatpush1.msra.mxu0 0.0
      %873 = vmatprep.subr.mxu0 0.0
      %874 = vmatpush1.msra.mxu0 0.0
      %875 = vmatprep.subr.mxu0 0.0
      %876 = vmatpush1.msra.mxu0 0.0
      %877 = vmatprep.subr.mxu0 0.0
      %878 = vmatpush1.msra.mxu0 0.0
      %879 = vmatprep.subr.mxu0 0.0
      %880 = vmatpush1.msra.mxu0 0.0
      %881 = vmatprep.subr.mxu0 0.0
      %882 = vmatpush1.msra.mxu0 0.0
      %883 = vmatprep.subr.mxu0 0.0
      %884 = vmatpush1.msra.mxu0 0.0
      %885 = vmatprep.subr.mxu0 0.0
      %886 = vmatpush1.msra.mxu0 0.0
      %887 = vmatprep.mubr.f32.mxu0 0.0
      %888 = vmatmul.mubr.f32.gmra.mrb[0].mxu0 %v821
      %v889 = vpop.f32.mrb[0].mxu0
      %v890 = vadd.f32 0.0, %v889
      %v891 = vpop.f32.mrb[0].mxu0
      %v892 = vadd.f32 0.0, %v891
      %893 = vdwg.mxu0
      %894 = vmatprep.subr.mxu0 %v110
      %895 = vmatpush1.msra.mxu0 %v109
      %896 = vmatprep.subr.mxu0 %v114
      %897 = vmatpush1.msra.mxu0 %v113
      %898 = vmatprep.subr.mxu0 %v118
      %899 = vmatpush1.msra.mxu0 %v117
      %900 = vmatprep.subr.mxu0 %v122
      %901 = vmatpush1.msra.mxu0 %v121
      %902 = vmatprep.subr.mxu0 %v126
      %903 = vmatpush1.msra.mxu0 %v125
      %904 = vmatprep.subr.mxu0 %v130
      %905 = vmatpush1.msra.mxu0 %v129
      %906 = vmatprep.subr.mxu0 %v134
      %907 = vmatpush1.msra.mxu0 %v133
      %908 = vmatprep.subr.mxu0 %v138
      %909 = vmatpush1.msra.mxu0 %v137
      %910 = vmatprep.subr.mxu0 %v142
      %911 = vmatpush1.msra.mxu0 %v141
      %912 = vmatprep.subr.mxu0 %v146
      %913 = vmatpush1.msra.mxu0 %v145
      %914 = vmatprep.subr.mxu0 %v150
      %915 = vmatpush1.msra.mxu0 %v149
      %916 = vmatprep.subr.mxu0 %v154
      %917 = vmatpush1.msra.mxu0 %v153
      %918 = vmatprep.subr.mxu0 %v158
      %919 = vmatpush1.msra.mxu0 %v157
      %920 = vmatprep.subr.mxu0 %v162
      %921 = vmatpush1.msra.mxu0 %v161
      %922 = vmatprep.subr.mxu0 %v166
      %923 = vmatpush1.msra.mxu0 %v165
      %924 = vmatprep.subr.mxu0 %v170
      %925 = vmatpush1.msra.mxu0 %v169
      %926 = vmatprep.subr.mxu0 0.0
      %927 = vmatpush1.msra.mxu0 0.0
      %928 = vmatprep.subr.mxu0 0.0
      %929 = vmatpush1.msra.mxu0 0.0
      %930 = vmatprep.subr.mxu0 0.0
      %931 = vmatpush1.msra.mxu0 0.0
      %932 = vmatprep.subr.mxu0 0.0
      %933 = vmatpush1.msra.mxu0 0.0
      %934 = vmatprep.subr.mxu0 0.0
      %935 = vmatpush1.msra.mxu0 0.0
      %936 = vmatprep.subr.mxu0 0.0
      %937 = vmatpush1.msra.mxu0 0.0
      %938 = vmatprep.subr.mxu0 0.0
      %939 = vmatpush1.msra.mxu0 0.0
      %940 = vmatprep.subr.mxu0 0.0
      %941 = vmatpush1.msra.mxu0 0.0
      %942 = vmatprep.subr.mxu0 0.0
      %943 = vmatpush1.msra.mxu0 0.0
      %944 = vmatprep.subr.mxu0 0.0
      %945 = vmatpush1.msra.mxu0 0.0
      %946 = vmatprep.subr.mxu0 0.0
      %947 = vmatpush1.msra.mxu0 0.0
      %948 = vmatprep.subr.mxu0 0.0
      %949 = vmatpush1.msra.mxu0 0.0
      %950 = vmatprep.subr.mxu0 0.0
      %951 = vmatpush1.msra.mxu0 0.0
      %952 = vmatprep.subr.mxu0 0.0
      %953 = vmatpush1.msra.mxu0 0.0
      %954 = vmatprep.subr.mxu0 0.0
      %955 = vmatpush1.msra.mxu0 0.0
      %956 = vmatprep.subr.mxu0 0.0
      %957 = vmatpush1.msra.mxu0 0.0
      %958 = vmatprep.mubr.f32.mxu0 0.0
      %959 = vmatmul.mubr.f32.gmra.mrb[0].mxu0 %v821
      %v960 = vpop.f32.mrb[0].mxu0
      %v961 = vadd.f32 0.0, %v960
      %v962 = vpop.f32.mrb[0].mxu0
      %v963 = vadd.f32 0.0, %v962
      %964 = vdwg.mxu0
      %v965 = vadd.f32 %v313, %v890
      %v966 = vadd.f32 %v315, %v892
      %v967 = vadd.f32 %v426, %v961
      %v968 = vadd.f32 %v428, %v963
      %v969 = vxor.u32 %v965, 2147483648
      %v970 = vxor.u32 %v966, 2147483648
      %v971 = vxor.u32 %v967, 2147483648
      %v972 = vmul.f32 %v969, 1.442695
      %v973 = vpow.pop %v972
      %v974 = vmul.f32 %v970, 1.442695
      %v975 = vpow.pop %v974
      %v976 = vmul.f32 %v971, 1.442695
      %v977 = vpow.pop %v976
      %v978 = vadd.f32 %v973, 1.0
      %v979 = vadd.f32 %v975, 1.0
      %v980 = vadd.f32 %v977, 1.0
      %v981 = vrcp.pop %v978
      %v982 = vmul.f32 1.0, %v981
      %v983 = vrcp.pop %v979
      %v984 = vmul.f32 1.0, %v983
      %v985 = vrcp.pop %v980
      %v986 = vmul.f32 1.0, %v985
      %v987 = vtanh.pop %v968
      %v988 = vmul.f32 %v984, %v822
      %v989 = vmul.f32 %v982, %v987
      %v990 = vadd.f32 %v988, %v989
      %v991 = vtanh.pop %v990
      %v992 = vmul.f32 %v986, %v991
      %s993 = sadd.s32 %s461, 2
      %v994 = vstv %s993
      %vm995 = vcmp.lt.s32.totalorder %v994, %v460
      %v996 = vsel %vm995, 1, 0
      %997 = vset.pattern.permute.xlu0 0
      %998 = vperm.xlu0 %997, %v996
      %v999 = vpop.permute.xlu0 %998
      %vm1000 = vcmp.eq.s32.totalorder %v999, 1
      %v1001 = vsel %vm1000, %v992, %v821
      %v1002 = vsel %vm1000, %v990, %v822
      %1003 = vmatprep.subr.mxu0 %v108
      %1004 = vmatpush1.msra.mxu0 %v107
      %1005 = vmatprep.subr.mxu0 %v112
      %1006 = vmatpush1.msra.mxu0 %v111
      %1007 = vmatprep.subr.mxu0 %v116
      %1008 = vmatpush1.msra.mxu0 %v115
      %1009 = vmatprep.subr.mxu0 %v120
      %1010 = vmatpush1.msra.mxu0 %v119
      %1011 = vmatprep.subr.mxu0 %v124
      %1012 = vmatpush1.msra.mxu0 %v123
      %1013 = vmatprep.subr.mxu0 %v128
      %1014 = vmatpush1.msra.mxu0 %v127
      %1015 = vmatprep.subr.mxu0 %v132
      %1016 = vmatpush1.msra.mxu0 %v131
      %1017 = vmatprep.subr.mxu0 %v136
      %1018 = vmatpush1.msra.mxu0 %v135
      %1019 = vmatprep.subr.mxu0 %v140
      %1020 = vmatpush1.msra.mxu0 %v139
      %1021 = vmatprep.subr.mxu0 %v144
      %1022 = vmatpush1.msra.mxu0 %v143
      %1023 = vmatprep.subr.mxu0 %v148
      %1024 = vmatpush1.msra.mxu0 %v147
      %1025 = vmatprep.subr.mxu0 %v152
      %1026 = vmatpush1.msra.mxu0 %v151
      %1027 = vmatprep.subr.mxu0 %v156
      %1028 = vmatpush1.msra.mxu0 %v155
      %1029 = vmatprep.subr.mxu0 %v160
      %1030 = vmatpush1.msra.mxu0 %v159
      %1031 = vmatprep.subr.mxu0 %v164
      %1032 = vmatpush1.msra.mxu0 %v163
      %1033 = vmatprep.subr.mxu0 %v168
      %1034 = vmatpush1.msra.mxu0 %v167
      %1035 = vmatprep.subr.mxu0 0.0
      %1036 = vmatpush1.msra.mxu0 0.0
      %1037 = vmatprep.subr.mxu0 0.0
      %1038 = vmatpush1.msra.mxu0 0.0
      %1039 = vmatprep.subr.mxu0 0.0
      %1040 = vmatpush1.msra.mxu0 0.0
      %1041 = vmatprep.subr.mxu0 0.0
      %1042 = vmatpush1.msra.mxu0 0.0
      %1043 = vmatprep.subr.mxu0 0.0
      %1044 = vmatpush1.msra.mxu0 0.0
      %1045 = vmatprep.subr.mxu0 0.0
      %1046 = vmatpush1.msra.mxu0 0.0
      %1047 = vmatprep.subr.mxu0 0.0
      %1048 = vmatpush1.msra.mxu0 0.0
      %1049 = vmatprep.subr.mxu0 0.0
      %1050 = vmatpush1.msra.mxu0 0.0
      %1051 = vmatprep.subr.mxu0 0.0
      %1052 = vmatpush1.msra.mxu0 0.0
      %1053 = vmatprep.subr.mxu0 0.0
      %1054 = vmatpush1.msra.mxu0 0.0
      %1055 = vmatprep.subr.mxu0 0.0
      %1056 = vmatpush1.msra.mxu0 0.0
      %1057 = vmatprep.subr.mxu0 0.0
      %1058 = vmatpush1.msra.mxu0 0.0
      %1059 = vmatprep.subr.mxu0 0.0
      %1060 = vmatpush1.msra.mxu0 0.0
      %1061 = vmatprep.subr.mxu0 0.0
      %1062 = vmatpush1.msra.mxu0 0.0
      %1063 = vmatprep.subr.mxu0 0.0
      %1064 = vmatpush1.msra.mxu0 0.0
      %1065 = vmatprep.subr.mxu0 0.0
      %1066 = vmatpush1.msra.mxu0 0.0
      %1067 = vmatprep.mubr.f32.mxu0 0.0
      %1068 = vmatmul.mubr.f32.gmra.mrb[0].mxu0 %v1001
      %v1069 = vpop.f32.mrb[0].mxu0
      %v1070 = vadd.f32 0.0, %v1069
      %v1071 = vpop.f32.mrb[0].mxu0
      %v1072 = vadd.f32 0.0, %v1071
      %1073 = vdwg.mxu0
      %1074 = vmatprep.subr.mxu0 %v110
      %1075 = vmatpush1.msra.mxu0 %v109
      %1076 = vmatprep.subr.mxu0 %v114
      %1077 = vmatpush1.msra.mxu0 %v113
      %1078 = vmatprep.subr.mxu0 %v118
      %1079 = vmatpush1.msra.mxu0 %v117
      %1080 = vmatprep.subr.mxu0 %v122
      %1081 = vmatpush1.msra.mxu0 %v121
      %1082 = vmatprep.subr.mxu0 %v126
      %1083 = vmatpush1.msra.mxu0 %v125
      %1084 = vmatprep.subr.mxu0 %v130
      %1085 = vmatpush1.msra.mxu0 %v129
      %1086 = vmatprep.subr.mxu0 %v134
      %1087 = vmatpush1.msra.mxu0 %v133
      %1088 = vmatprep.subr.mxu0 %v138
      %1089 = vmatpush1.msra.mxu0 %v137
      %1090 = vmatprep.subr.mxu0 %v142
      %1091 = vmatpush1.msra.mxu0 %v141
      %1092 = vmatprep.subr.mxu0 %v146
      %1093 = vmatpush1.msra.mxu0 %v145
      %1094 = vmatprep.subr.mxu0 %v150
      %1095 = vmatpush1.msra.mxu0 %v149
      %1096 = vmatprep.subr.mxu0 %v154
      %1097 = vmatpush1.msra.mxu0 %v153
      %1098 = vmatprep.subr.mxu0 %v158
      %1099 = vmatpush1.msra.mxu0 %v157
      %1100 = vmatprep.subr.mxu0 %v162
      %1101 = vmatpush1.msra.mxu0 %v161
      %1102 = vmatprep.subr.mxu0 %v166
      %1103 = vmatpush1.msra.mxu0 %v165
      %1104 = vmatprep.subr.mxu0 %v170
      %1105 = vmatpush1.msra.mxu0 %v169
      %1106 = vmatprep.subr.mxu0 0.0
      %1107 = vmatpush1.msra.mxu0 0.0
      %1108 = vmatprep.subr.mxu0 0.0
      %1109 = vmatpush1.msra.mxu0 0.0
      %1110 = vmatprep.subr.mxu0 0.0
      %1111 = vmatpush1.msra.mxu0 0.0
      %1112 = vmatprep.subr.mxu0 0.0
      %1113 = vmatpush1.msra.mxu0 0.0
      %1114 = vmatprep.subr.mxu0 0.0
      %1115 = vmatpush1.msra.mxu0 0.0
      %1116 = vmatprep.subr.mxu0 0.0
      %1117 = vmatpush1.msra.mxu0 0.0
      %1118 = vmatprep.subr.mxu0 0.0
      %1119 = vmatpush1.msra.mxu0 0.0
      %1120 = vmatprep.subr.mxu0 0.0
      %1121 = vmatpush1.msra.mxu0 0.0
      %1122 = vmatprep.subr.mxu0 0.0
      %1123 = vmatpush1.msra.mxu0 0.0
      %1124 = vmatprep.subr.mxu0 0.0
      %1125 = vmatpush1.msra.mxu0 0.0
      %1126 = vmatprep.subr.mxu0 0.0
      %1127 = vmatpush1.msra.mxu0 0.0
      %1128 = vmatprep.subr.mxu0 0.0
      %1129 = vmatpush1.msra.mxu0 0.0
      %1130 = vmatprep.subr.mxu0 0.0
      %1131 = vmatpush1.msra.mxu0 0.0
      %1132 = vmatprep.subr.mxu0 0.0
      %1133 = vmatpush1.msra.mxu0 0.0
      %1134 = vmatprep.subr.mxu0 0.0
      %1135 = vmatpush1.msra.mxu0 0.0
      %1136 = vmatprep.subr.mxu0 0.0
      %1137 = vmatpush1.msra.mxu0 0.0
      %1138 = vmatprep.mubr.f32.mxu0 0.0
      %1139 = vmatmul.mubr.f32.gmra.mrb[0].mxu0 %v1001
      %v1140 = vpop.f32.mrb[0].mxu0
      %v1141 = vadd.f32 0.0, %v1140
      %v1142 = vpop.f32.mrb[0].mxu0
      %v1143 = vadd.f32 0.0, %v1142
      %1144 = vdwg.mxu0
      %v1145 = vadd.f32 %v319, %v1070
      %v1146 = vadd.f32 %v321, %v1072
      %v1147 = vadd.f32 %v432, %v1141
      %v1148 = vadd.f32 %v434, %v1143
      %v1149 = vxor.u32 %v1145, 2147483648
      %v1150 = vxor.u32 %v1146, 2147483648
      %v1151 = vxor.u32 %v1147, 2147483648
      %v1152 = vmul.f32 %v1149, 1.442695
      %v1153 = vpow.pop %v1152
      %v1154 = vmul.f32 %v1150, 1.442695
      %v1155 = vpow.pop %v1154
      %v1156 = vmul.f32 %v1151, 1.442695
      %v1157 = vpow.pop %v1156
      %v1158 = vadd.f32 %v1153, 1.0
      %v1159 = vadd.f32 %v1155, 1.0
      %v1160 = vadd.f32 %v1157, 1.0
      %v1161 = vrcp.pop %v1158
      %v1162 = vmul.f32 1.0, %v1161
      %v1163 = vrcp.pop %v1159
      %v1164 = vmul.f32 1.0, %v1163
      %v1165 = vrcp.pop %v1160
      %v1166 = vmul.f32 1.0, %v1165
      %v1167 = vtanh.pop %v1148
      %v1168 = vmul.f32 %v1164, %v1002
      %v1169 = vmul.f32 %v1162, %v1167
      %v1170 = vadd.f32 %v1168, %v1169
      %v1171 = vtanh.pop %v1170
      %v1172 = vmul.f32 %v1166, %v1171
      %s1173 = sadd.s32 %s461, 3
      %v1174 = vstv %s1173
      %vm1175 = vcmp.lt.s32.totalorder %v1174, %v460
      %v1176 = vsel %vm1175, 1, 0
      %1177 = vset.pattern.permute.xlu0 0
      %1178 = vperm.xlu0 %1177, %v1176
      %v1179 = vpop.permute.xlu0 %1178
      %vm1180 = vcmp.eq.s32.totalorder %v1179, 1
      %v1181 = vsel %vm1180, %v1172, %v1001
      %v1182 = vsel %vm1180, %v1170, %v1002
      %1183 = vmatprep.subr.mxu0 %v108
      %1184 = vmatpush1.msra.mxu0 %v107
      %1185 = vmatprep.subr.mxu0 %v112
      %1186 = vmatpush1.msra.mxu0 %v111
      %1187 = vmatprep.subr.mxu0 %v116
      %1188 = vmatpush1.msra.mxu0 %v115
      %1189 = vmatprep.subr.mxu0 %v120
      %1190 = vmatpush1.msra.mxu0 %v119
      %1191 = vmatprep.subr.mxu0 %v124
      %1192 = vmatpush1.msra.mxu0 %v123
      %1193 = vmatprep.subr.mxu0 %v128
      %1194 = vmatpush1.msra.mxu0 %v127
      %1195 = vmatprep.subr.mxu0 %v132
      %1196 = vmatpush1.msra.mxu0 %v131
      %1197 = vmatprep.subr.mxu0 %v136
      %1198 = vmatpush1.msra.mxu0 %v135
      %1199 = vmatprep.subr.mxu0 %v140
      %1200 = vmatpush1.msra.mxu0 %v139
      %1201 = vmatprep.subr.mxu0 %v144
      %1202 = vmatpush1.msra.mxu0 %v143
      %1203 = vmatprep.subr.mxu0 %v148
      %1204 = vmatpush1.msra.mxu0 %v147
      %1205 = vmatprep.subr.mxu0 %v152
      %1206 = vmatpush1.msra.mxu0 %v151
      %1207 = vmatprep.subr.mxu0 %v156
      %1208 = vmatpush1.msra.mxu0 %v155
      %1209 = vmatprep.subr.mxu0 %v160
      %1210 = vmatpush1.msra.mxu0 %v159
      %1211 = vmatprep.subr.mxu0 %v164
      %1212 = vmatpush1.msra.mxu0 %v163
      %1213 = vmatprep.subr.mxu0 %v168
      %1214 = vmatpush1.msra.mxu0 %v167
      %1215 = vmatprep.subr.mxu0 0.0
      %1216 = vmatpush1.msra.mxu0 0.0
      %1217 = vmatprep.subr.mxu0 0.0
      %1218 = vmatpush1.msra.mxu0 0.0
      %1219 = vmatprep.subr.mxu0 0.0
      %1220 = vmatpush1.msra.mxu0 0.0
      %1221 = vmatprep.subr.mxu0 0.0
      %1222 = vmatpush1.msra.mxu0 0.0
      %1223 = vmatprep.subr.mxu0 0.0
      %1224 = vmatpush1.msra.mxu0 0.0
      %1225 = vmatprep.subr.mxu0 0.0
      %1226 = vmatpush1.msra.mxu0 0.0
      %1227 = vmatprep.subr.mxu0 0.0
      %1228 = vmatpush1.msra.mxu0 0.0
      %1229 = vmatprep.subr.mxu0 0.0
      %1230 = vmatpush1.msra.mxu0 0.0
      %1231 = vmatprep.subr.mxu0 0.0
      %1232 = vmatpush1.msra.mxu0 0.0
      %1233 = vmatprep.subr.mxu0 0.0
      %1234 = vmatpush1.msra.mxu0 0.0
      %1235 = vmatprep.subr.mxu0 0.0
      %1236 = vmatpush1.msra.mxu0 0.0
      %1237 = vmatprep.subr.mxu0 0.0
      %1238 = vmatpush1.msra.mxu0 0.0
      %1239 = vmatprep.subr.mxu0 0.0
      %1240 = vmatpush1.msra.mxu0 0.0
      %1241 = vmatprep.subr.mxu0 0.0
      %1242 = vmatpush1.msra.mxu0 0.0
      %1243 = vmatprep.subr.mxu0 0.0
      %1244 = vmatpush1.msra.mxu0 0.0
      %1245 = vmatprep.subr.mxu0 0.0
      %1246 = vmatpush1.msra.mxu0 0.0
      %1247 = vmatprep.mubr.f32.mxu0 0.0
      %1248 = vmatmul.mubr.f32.gmra.mrb[0].mxu0 %v1181
      %v1249 = vpop.f32.mrb[0].mxu0
      %v1250 = vadd.f32 0.0, %v1249
      %v1251 = vpop.f32.mrb[0].mxu0
      %v1252 = vadd.f32 0.0, %v1251
      %1253 = vdwg.mxu0
      %1254 = vmatprep.subr.mxu0 %v110
      %1255 = vmatpush1.msra.mxu0 %v109
      %1256 = vmatprep.subr.mxu0 %v114
      %1257 = vmatpush1.msra.mxu0 %v113
      %1258 = vmatprep.subr.mxu0 %v118
      %1259 = vmatpush1.msra.mxu0 %v117
      %1260 = vmatprep.subr.mxu0 %v122
      %1261 = vmatpush1.msra.mxu0 %v121
      %1262 = vmatprep.subr.mxu0 %v126
      %1263 = vmatpush1.msra.mxu0 %v125
      %1264 = vmatprep.subr.mxu0 %v130
      %1265 = vmatpush1.msra.mxu0 %v129
      %1266 = vmatprep.subr.mxu0 %v134
      %1267 = vmatpush1.msra.mxu0 %v133
      %1268 = vmatprep.subr.mxu0 %v138
      %1269 = vmatpush1.msra.mxu0 %v137
      %1270 = vmatprep.subr.mxu0 %v142
      %1271 = vmatpush1.msra.mxu0 %v141
      %1272 = vmatprep.subr.mxu0 %v146
      %1273 = vmatpush1.msra.mxu0 %v145
      %1274 = vmatprep.subr.mxu0 %v150
      %1275 = vmatpush1.msra.mxu0 %v149
      %1276 = vmatprep.subr.mxu0 %v154
      %1277 = vmatpush1.msra.mxu0 %v153
      %1278 = vmatprep.subr.mxu0 %v158
      %1279 = vmatpush1.msra.mxu0 %v157
      %1280 = vmatprep.subr.mxu0 %v162
      %1281 = vmatpush1.msra.mxu0 %v161
      %1282 = vmatprep.subr.mxu0 %v166
      %1283 = vmatpush1.msra.mxu0 %v165
      %1284 = vmatprep.subr.mxu0 %v170
      %1285 = vmatpush1.msra.mxu0 %v169
      %1286 = vmatprep.subr.mxu0 0.0
      %1287 = vmatpush1.msra.mxu0 0.0
      %1288 = vmatprep.subr.mxu0 0.0
      %1289 = vmatpush1.msra.mxu0 0.0
      %1290 = vmatprep.subr.mxu0 0.0
      %1291 = vmatpush1.msra.mxu0 0.0
      %1292 = vmatprep.subr.mxu0 0.0
      %1293 = vmatpush1.msra.mxu0 0.0
      %1294 = vmatprep.subr.mxu0 0.0
      %1295 = vmatpush1.msra.mxu0 0.0
      %1296 = vmatprep.subr.mxu0 0.0
      %1297 = vmatpush1.msra.mxu0 0.0
      %1298 = vmatprep.subr.mxu0 0.0
      %1299 = vmatpush1.msra.mxu0 0.0
      %1300 = vmatprep.subr.mxu0 0.0
      %1301 = vmatpush1.msra.mxu0 0.0
      %1302 = vmatprep.subr.mxu0 0.0
      %1303 = vmatpush1.msra.mxu0 0.0
      %1304 = vmatprep.subr.mxu0 0.0
      %1305 = vmatpush1.msra.mxu0 0.0
      %1306 = vmatprep.subr.mxu0 0.0
      %1307 = vmatpush1.msra.mxu0 0.0
      %1308 = vmatprep.subr.mxu0 0.0
      %1309 = vmatpush1.msra.mxu0 0.0
      %1310 = vmatprep.subr.mxu0 0.0
      %1311 = vmatpush1.msra.mxu0 0.0
      %1312 = vmatprep.subr.mxu0 0.0
      %1313 = vmatpush1.msra.mxu0 0.0
      %1314 = vmatprep.subr.mxu0 0.0
      %1315 = vmatpush1.msra.mxu0 0.0
      %1316 = vmatprep.subr.mxu0 0.0
      %1317 = vmatpush1.msra.mxu0 0.0
      %1318 = vmatprep.mubr.f32.mxu0 0.0
      %1319 = vmatmul.mubr.f32.gmra.mrb[0].mxu0 %v1181
      %v1320 = vpop.f32.mrb[0].mxu0
      %v1321 = vadd.f32 0.0, %v1320
      %v1322 = vpop.f32.mrb[0].mxu0
      %v1323 = vadd.f32 0.0, %v1322
      %1324 = vdwg.mxu0
      %v1325 = vadd.f32 %v325, %v1250
      %v1326 = vadd.f32 %v327, %v1252
      %v1327 = vadd.f32 %v438, %v1321
      %v1328 = vadd.f32 %v440, %v1323
      %v1329 = vxor.u32 %v1325, 2147483648
      %v1330 = vxor.u32 %v1326, 2147483648
      %v1331 = vxor.u32 %v1327, 2147483648
      %v1332 = vmul.f32 %v1329, 1.442695
      %v1333 = vpow.pop %v1332
      %v1334 = vmul.f32 %v1330, 1.442695
      %v1335 = vpow.pop %v1334
      %v1336 = vmul.f32 %v1331, 1.442695
      %v1337 = vpow.pop %v1336
      %v1338 = vadd.f32 %v1333, 1.0
      %v1339 = vadd.f32 %v1335, 1.0
      %v1340 = vadd.f32 %v1337, 1.0
      %v1341 = vrcp.pop %v1338
      %v1342 = vmul.f32 1.0, %v1341
      %v1343 = vrcp.pop %v1339
      %v1344 = vmul.f32 1.0, %v1343
      %v1345 = vrcp.pop %v1340
      %v1346 = vmul.f32 1.0, %v1345
      %v1347 = vtanh.pop %v1328
      %v1348 = vmul.f32 %v1344, %v1182
      %v1349 = vmul.f32 %v1342, %v1347
      %v1350 = vadd.f32 %v1348, %v1349
      %v1351 = vtanh.pop %v1350
      %v1352 = vmul.f32 %v1346, %v1351
      %s1353 = sadd.s32 %s461, 4
      %v1354 = vstv %s1353
      %vm1355 = vcmp.lt.s32.totalorder %v1354, %v460
      %v1356 = vsel %vm1355, 1, 0
      %1357 = vset.pattern.permute.xlu0 0
      %1358 = vperm.xlu0 %1357, %v1356
      %v1359 = vpop.permute.xlu0 %1358
      %vm1360 = vcmp.eq.s32.totalorder %v1359, 1
      %v1361 = vsel %vm1360, %v1352, %v1181
      %v1362 = vsel %vm1360, %v1350, %v1182
      %1363 = vmatprep.subr.mxu0 %v108
      %1364 = vmatpush1.msra.mxu0 %v107
      %1365 = vmatprep.subr.mxu0 %v112
      %1366 = vmatpush1.msra.mxu0 %v111
      %1367 = vmatprep.subr.mxu0 %v116
      %1368 = vmatpush1.msra.mxu0 %v115
      %1369 = vmatprep.subr.mxu0 %v120
      %1370 = vmatpush1.msra.mxu0 %v119
      %1371 = vmatprep.subr.mxu0 %v124
      %1372 = vmatpush1.msra.mxu0 %v123
      %1373 = vmatprep.subr.mxu0 %v128
      %1374 = vmatpush1.msra.mxu0 %v127
      %1375 = vmatprep.subr.mxu0 %v132
      %1376 = vmatpush1.msra.mxu0 %v131
      %1377 = vmatprep.subr.mxu0 %v136
      %1378 = vmatpush1.msra.mxu0 %v135
      %1379 = vmatprep.subr.mxu0 %v140
      %1380 = vmatpush1.msra.mxu0 %v139
      %1381 = vmatprep.subr.mxu0 %v144
      %1382 = vmatpush1.msra.mxu0 %v143
      %1383 = vmatprep.subr.mxu0 %v148
      %1384 = vmatpush1.msra.mxu0 %v147
      %1385 = vmatprep.subr.mxu0 %v152
      %1386 = vmatpush1.msra.mxu0 %v151
      %1387 = vmatprep.subr.mxu0 %v156
      %1388 = vmatpush1.msra.mxu0 %v155
      %1389 = vmatprep.subr.mxu0 %v160
      %1390 = vmatpush1.msra.mxu0 %v159
      %1391 = vmatprep.subr.mxu0 %v164
      %1392 = vmatpush1.msra.mxu0 %v163
      %1393 = vmatprep.subr.mxu0 %v168
      %1394 = vmatpush1.msra.mxu0 %v167
      %1395 = vmatprep.subr.mxu0 0.0
      %1396 = vmatpush1.msra.mxu0 0.0
      %1397 = vmatprep.subr.mxu0 0.0
      %1398 = vmatpush1.msra.mxu0 0.0
      %1399 = vmatprep.subr.mxu0 0.0
      %1400 = vmatpush1.msra.mxu0 0.0
      %1401 = vmatprep.subr.mxu0 0.0
      %1402 = vmatpush1.msra.mxu0 0.0
      %1403 = vmatprep.subr.mxu0 0.0
      %1404 = vmatpush1.msra.mxu0 0.0
      %1405 = vmatprep.subr.mxu0 0.0
      %1406 = vmatpush1.msra.mxu0 0.0
      %1407 = vmatprep.subr.mxu0 0.0
      %1408 = vmatpush1.msra.mxu0 0.0
      %1409 = vmatprep.subr.mxu0 0.0
      %1410 = vmatpush1.msra.mxu0 0.0
      %1411 = vmatprep.subr.mxu0 0.0
      %1412 = vmatpush1.msra.mxu0 0.0
      %1413 = vmatprep.subr.mxu0 0.0
      %1414 = vmatpush1.msra.mxu0 0.0
      %1415 = vmatprep.subr.mxu0 0.0
      %1416 = vmatpush1.msra.mxu0 0.0
      %1417 = vmatprep.subr.mxu0 0.0
      %1418 = vmatpush1.msra.mxu0 0.0
      %1419 = vmatprep.subr.mxu0 0.0
      %1420 = vmatpush1.msra.mxu0 0.0
      %1421 = vmatprep.subr.mxu0 0.0
      %1422 = vmatpush1.msra.mxu0 0.0
      %1423 = vmatprep.subr.mxu0 0.0
      %1424 = vmatpush1.msra.mxu0 0.0
      %1425 = vmatprep.subr.mxu0 0.0
      %1426 = vmatpush1.msra.mxu0 0.0
      %1427 = vmatprep.mubr.f32.mxu0 0.0
      %1428 = vmatmul.mubr.f32.gmra.mrb[0].mxu0 %v1361
      %v1429 = vpop.f32.mrb[0].mxu0
      %v1430 = vadd.f32 0.0, %v1429
      %v1431 = vpop.f32.mrb[0].mxu0
      %v1432 = vadd.f32 0.0, %v1431
      %1433 = vdwg.mxu0
      %1434 = vmatprep.subr.mxu0 %v110
      %1435 = vmatpush1.msra.mxu0 %v109
      %1436 = vmatprep.subr.mxu0 %v114
      %1437 = vmatpush1.msra.mxu0 %v113
      %1438 = vmatprep.subr.mxu0 %v118
      %1439 = vmatpush1.msra.mxu0 %v117
      %1440 = vmatprep.subr.mxu0 %v122
      %1441 = vmatpush1.msra.mxu0 %v121
      %1442 = vmatprep.subr.mxu0 %v126
      %1443 = vmatpush1.msra.mxu0 %v125
      %1444 = vmatprep.subr.mxu0 %v130
      %1445 = vmatpush1.msra.mxu0 %v129
      %1446 = vmatprep.subr.mxu0 %v134
      %1447 = vmatpush1.msra.mxu0 %v133
      %1448 = vmatprep.subr.mxu0 %v138
      %1449 = vmatpush1.msra.mxu0 %v137
      %1450 = vmatprep.subr.mxu0 %v142
      %1451 = vmatpush1.msra.mxu0 %v141
      %1452 = vmatprep.subr.mxu0 %v146
      %1453 = vmatpush1.msra.mxu0 %v145
      %1454 = vmatprep.subr.mxu0 %v150
      %1455 = vmatpush1.msra.mxu0 %v149
      %1456 = vmatprep.subr.mxu0 %v154
      %1457 = vmatpush1.msra.mxu0 %v153
      %1458 = vmatprep.subr.mxu0 %v158
      %1459 = vmatpush1.msra.mxu0 %v157
      %1460 = vmatprep.subr.mxu0 %v162
      %1461 = vmatpush1.msra.mxu0 %v161
      %1462 = vmatprep.subr.mxu0 %v166
      %1463 = vmatpush1.msra.mxu0 %v165
      %1464 = vmatprep.subr.mxu0 %v170
      %1465 = vmatpush1.msra.mxu0 %v169
      %1466 = vmatprep.subr.mxu0 0.0
      %1467 = vmatpush1.msra.mxu0 0.0
      %1468 = vmatprep.subr.mxu0 0.0
      %1469 = vmatpush1.msra.mxu0 0.0
      %1470 = vmatprep.subr.mxu0 0.0
      %1471 = vmatpush1.msra.mxu0 0.0
      %1472 = vmatprep.subr.mxu0 0.0
      %1473 = vmatpush1.msra.mxu0 0.0
      %1474 = vmatprep.subr.mxu0 0.0
      %1475 = vmatpush1.msra.mxu0 0.0
      %1476 = vmatprep.subr.mxu0 0.0
      %1477 = vmatpush1.msra.mxu0 0.0
      %1478 = vmatprep.subr.mxu0 0.0
      %1479 = vmatpush1.msra.mxu0 0.0
      %1480 = vmatprep.subr.mxu0 0.0
      %1481 = vmatpush1.msra.mxu0 0.0
      %1482 = vmatprep.subr.mxu0 0.0
      %1483 = vmatpush1.msra.mxu0 0.0
      %1484 = vmatprep.subr.mxu0 0.0
      %1485 = vmatpush1.msra.mxu0 0.0
      %1486 = vmatprep.subr.mxu0 0.0
      %1487 = vmatpush1.msra.mxu0 0.0
      %1488 = vmatprep.subr.mxu0 0.0
      %1489 = vmatpush1.msra.mxu0 0.0
      %1490 = vmatprep.subr.mxu0 0.0
      %1491 = vmatpush1.msra.mxu0 0.0
      %1492 = vmatprep.subr.mxu0 0.0
      %1493 = vmatpush1.msra.mxu0 0.0
      %1494 = vmatprep.subr.mxu0 0.0
      %1495 = vmatpush1.msra.mxu0 0.0
      %1496 = vmatprep.subr.mxu0 0.0
      %1497 = vmatpush1.msra.mxu0 0.0
      %1498 = vmatprep.mubr.f32.mxu0 0.0
      %1499 = vmatmul.mubr.f32.gmra.mrb[0].mxu0 %v1361
      %v1500 = vpop.f32.mrb[0].mxu0
      %v1501 = vadd.f32 0.0, %v1500
      %v1502 = vpop.f32.mrb[0].mxu0
      %v1503 = vadd.f32 0.0, %v1502
      %1504 = vdwg.mxu0
      %v1505 = vadd.f32 %v331, %v1430
      %v1506 = vadd.f32 %v333, %v1432
      %v1507 = vadd.f32 %v444, %v1501
      %v1508 = vadd.f32 %v446, %v1503
      %v1509 = vxor.u32 %v1505, 2147483648
      %v1510 = vxor.u32 %v1506, 2147483648
      %v1511 = vxor.u32 %v1507, 2147483648
      %v1512 = vmul.f32 %v1509, 1.442695
      %v1513 = vpow.pop %v1512
      %v1514 = vmul.f32 %v1510, 1.442695
      %v1515 = vpow.pop %v1514
      %v1516 = vmul.f32 %v1511, 1.442695
      %v1517 = vpow.pop %v1516
      %v1518 = vadd.f32 %v1513, 1.0
      %v1519 = vadd.f32 %v1515, 1.0
      %v1520 = vadd.f32 %v1517, 1.0
      %v1521 = vrcp.pop %v1518
      %v1522 = vmul.f32 1.0, %v1521
      %v1523 = vrcp.pop %v1519
      %v1524 = vmul.f32 1.0, %v1523
      %v1525 = vrcp.pop %v1520
      %v1526 = vmul.f32 1.0, %v1525
      %v1527 = vtanh.pop %v1508
      %v1528 = vmul.f32 %v1524, %v1362
      %v1529 = vmul.f32 %v1522, %v1527
      %v1530 = vadd.f32 %v1528, %v1529
      %v1531 = vtanh.pop %v1530
      %v1532 = vmul.f32 %v1526, %v1531
      %s1533 = sadd.s32 %s461, 5
      %v1534 = vstv %s1533
      %vm1535 = vcmp.lt.s32.totalorder %v1534, %v460
      %v1536 = vsel %vm1535, 1, 0
      %1537 = vset.pattern.permute.xlu0 0
      %1538 = vperm.xlu0 %1537, %v1536
      %v1539 = vpop.permute.xlu0 %1538
      %vm1540 = vcmp.eq.s32.totalorder %v1539, 1
      %v1541 = vsel %vm1540, %v1532, %v1361
      %v1542 = vsel %vm1540, %v1530, %v1362
      %1543 = vmatprep.subr.mxu0 %v108
      %1544 = vmatpush1.msra.mxu0 %v107
      %1545 = vmatprep.subr.mxu0 %v112
      %1546 = vmatpush1.msra.mxu0 %v111
      %1547 = vmatprep.subr.mxu0 %v116
      %1548 = vmatpush1.msra.mxu0 %v115
      %1549 = vmatprep.subr.mxu0 %v120
      %1550 = vmatpush1.msra.mxu0 %v119
      %1551 = vmatprep.subr.mxu0 %v124
      %1552 = vmatpush1.msra.mxu0 %v123
      %1553 = vmatprep.subr.mxu0 %v128
      %1554 = vmatpush1.msra.mxu0 %v127
      %1555 = vmatprep.subr.mxu0 %v132
      %1556 = vmatpush1.msra.mxu0 %v131
      %1557 = vmatprep.subr.mxu0 %v136
      %1558 = vmatpush1.msra.mxu0 %v135
      %1559 = vmatprep.subr.mxu0 %v140
      %1560 = vmatpush1.msra.mxu0 %v139
      %1561 = vmatprep.subr.mxu0 %v144
      %1562 = vmatpush1.msra.mxu0 %v143
      %1563 = vmatprep.subr.mxu0 %v148
      %1564 = vmatpush1.msra.mxu0 %v147
      %1565 = vmatprep.subr.mxu0 %v152
      %1566 = vmatpush1.msra.mxu0 %v151
      %1567 = vmatprep.subr.mxu0 %v156
      %1568 = vmatpush1.msra.mxu0 %v155
      %1569 = vmatprep.subr.mxu0 %v160
      %1570 = vmatpush1.msra.mxu0 %v159
      %1571 = vmatprep.subr.mxu0 %v164
      %1572 = vmatpush1.msra.mxu0 %v163
      %1573 = vmatprep.subr.mxu0 %v168
      %1574 = vmatpush1.msra.mxu0 %v167
      %1575 = vmatprep.subr.mxu0 0.0
      %1576 = vmatpush1.msra.mxu0 0.0
      %1577 = vmatprep.subr.mxu0 0.0
      %1578 = vmatpush1.msra.mxu0 0.0
      %1579 = vmatprep.subr.mxu0 0.0
      %1580 = vmatpush1.msra.mxu0 0.0
      %1581 = vmatprep.subr.mxu0 0.0
      %1582 = vmatpush1.msra.mxu0 0.0
      %1583 = vmatprep.subr.mxu0 0.0
      %1584 = vmatpush1.msra.mxu0 0.0
      %1585 = vmatprep.subr.mxu0 0.0
      %1586 = vmatpush1.msra.mxu0 0.0
      %1587 = vmatprep.subr.mxu0 0.0
      %1588 = vmatpush1.msra.mxu0 0.0
      %1589 = vmatprep.subr.mxu0 0.0
      %1590 = vmatpush1.msra.mxu0 0.0
      %1591 = vmatprep.subr.mxu0 0.0
      %1592 = vmatpush1.msra.mxu0 0.0
      %1593 = vmatprep.subr.mxu0 0.0
      %1594 = vmatpush1.msra.mxu0 0.0
      %1595 = vmatprep.subr.mxu0 0.0
      %1596 = vmatpush1.msra.mxu0 0.0
      %1597 = vmatprep.subr.mxu0 0.0
      %1598 = vmatpush1.msra.mxu0 0.0
      %1599 = vmatprep.subr.mxu0 0.0
      %1600 = vmatpush1.msra.mxu0 0.0
      %1601 = vmatprep.subr.mxu0 0.0
      %1602 = vmatpush1.msra.mxu0 0.0
      %1603 = vmatprep.subr.mxu0 0.0
      %1604 = vmatpush1.msra.mxu0 0.0
      %1605 = vmatprep.subr.mxu0 0.0
      %1606 = vmatpush1.msra.mxu0 0.0
      %1607 = vmatprep.mubr.f32.mxu0 0.0
      %1608 = vmatmul.mubr.f32.gmra.mrb[0].mxu0 %v1541
      %v1609 = vpop.f32.mrb[0].mxu0
      %v1610 = vadd.f32 0.0, %v1609
      %v1611 = vpop.f32.mrb[0].mxu0
      %v1612 = vadd.f32 0.0, %v1611
      %1613 = vdwg.mxu0
      %1614 = vmatprep.subr.mxu0 %v110
      %1615 = vmatpush1.msra.mxu0 %v109
      %1616 = vmatprep.subr.mxu0 %v114
      %1617 = vmatpush1.msra.mxu0 %v113
      %1618 = vmatprep.subr.mxu0 %v118
      %1619 = vmatpush1.msra.mxu0 %v117
      %1620 = vmatprep.subr.mxu0 %v122
      %1621 = vmatpush1.msra.mxu0 %v121
      %1622 = vmatprep.subr.mxu0 %v126
      %1623 = vmatpush1.msra.mxu0 %v125
      %1624 = vmatprep.subr.mxu0 %v130
      %1625 = vmatpush1.msra.mxu0 %v129
      %1626 = vmatprep.subr.mxu0 %v134
      %1627 = vmatpush1.msra.mxu0 %v133
      %1628 = vmatprep.subr.mxu0 %v138
      %1629 = vmatpush1.msra.mxu0 %v137
      %1630 = vmatprep.subr.mxu0 %v142
      %1631 = vmatpush1.msra.mxu0 %v141
      %1632 = vmatprep.subr.mxu0 %v146
      %1633 = vmatpush1.msra.mxu0 %v145
      %1634 = vmatprep.subr.mxu0 %v150
      %1635 = vmatpush1.msra.mxu0 %v149
      %1636 = vmatprep.subr.mxu0 %v154
      %1637 = vmatpush1.msra.mxu0 %v153
      %1638 = vmatprep.subr.mxu0 %v158
      %1639 = vmatpush1.msra.mxu0 %v157
      %1640 = vmatprep.subr.mxu0 %v162
      %1641 = vmatpush1.msra.mxu0 %v161
      %1642 = vmatprep.subr.mxu0 %v166
      %1643 = vmatpush1.msra.mxu0 %v165
      %1644 = vmatprep.subr.mxu0 %v170
      %1645 = vmatpush1.msra.mxu0 %v169
      %1646 = vmatprep.subr.mxu0 0.0
      %1647 = vmatpush1.msra.mxu0 0.0
      %1648 = vmatprep.subr.mxu0 0.0
      %1649 = vmatpush1.msra.mxu0 0.0
      %1650 = vmatprep.subr.mxu0 0.0
      %1651 = vmatpush1.msra.mxu0 0.0
      %1652 = vmatprep.subr.mxu0 0.0
      %1653 = vmatpush1.msra.mxu0 0.0
      %1654 = vmatprep.subr.mxu0 0.0
      %1655 = vmatpush1.msra.mxu0 0.0
      %1656 = vmatprep.subr.mxu0 0.0
      %1657 = vmatpush1.msra.mxu0 0.0
      %1658 = vmatprep.subr.mxu0 0.0
      %1659 = vmatpush1.msra.mxu0 0.0
      %1660 = vmatprep.subr.mxu0 0.0
      %1661 = vmatpush1.msra.mxu0 0.0
      %1662 = vmatprep.subr.mxu0 0.0
      %1663 = vmatpush1.msra.mxu0 0.0
      %1664 = vmatprep.subr.mxu0 0.0
      %1665 = vmatpush1.msra.mxu0 0.0
      %1666 = vmatprep.subr.mxu0 0.0
      %1667 = vmatpush1.msra.mxu0 0.0
      %1668 = vmatprep.subr.mxu0 0.0
      %1669 = vmatpush1.msra.mxu0 0.0
      %1670 = vmatprep.subr.mxu0 0.0
      %1671 = vmatpush1.msra.mxu0 0.0
      %1672 = vmatprep.subr.mxu0 0.0
      %1673 = vmatpush1.msra.mxu0 0.0
      %1674 = vmatprep.subr.mxu0 0.0
      %1675 = vmatpush1.msra.mxu0 0.0
      %1676 = vmatprep.subr.mxu0 0.0
      %1677 = vmatpush1.msra.mxu0 0.0
      %1678 = vmatprep.mubr.f32.mxu0 0.0
      %1679 = vmatmul.mubr.f32.gmra.mrb[0].mxu0 %v1541
      %v1680 = vpop.f32.mrb[0].mxu0
      %v1681 = vadd.f32 0.0, %v1680
      %v1682 = vpop.f32.mrb[0].mxu0
      %v1683 = vadd.f32 0.0, %v1682
      %1684 = vdwg.mxu0
      %v1685 = vadd.f32 %v337, %v1610
      %v1686 = vadd.f32 %v339, %v1612
      %v1687 = vadd.f32 %v450, %v1681
      %v1688 = vadd.f32 %v452, %v1683
      %v1689 = vxor.u32 %v1685, 2147483648
      %v1690 = vxor.u32 %v1686, 2147483648
      %v1691 = vxor.u32 %v1687, 2147483648
      %v1692 = vmul.f32 %v1689, 1.442695
      %v1693 = vpow.pop %v1692
      %v1694 = vmul.f32 %v1690, 1.442695
      %v1695 = vpow.pop %v1694
      %v1696 = vmul.f32 %v1691, 1.442695
      %v1697 = vpow.pop %v1696
      %v1698 = vadd.f32 %v1693, 1.0
      %v1699 = vadd.f32 %v1695, 1.0
      %v1700 = vadd.f32 %v1697, 1.0
      %v1701 = vrcp.pop %v1698
      %v1702 = vmul.f32 1.0, %v1701
      %v1703 = vrcp.pop %v1699
      %v1704 = vmul.f32 1.0, %v1703
      %v1705 = vrcp.pop %v1700
      %v1706 = vmul.f32 1.0, %v1705
      %v1707 = vtanh.pop %v1688
      %v1708 = vmul.f32 %v1704, %v1542
      %v1709 = vmul.f32 %v1702, %v1707
      %v1710 = vadd.f32 %v1708, %v1709
      %v1711 = vtanh.pop %v1710
      %v1712 = vmul.f32 %v1706, %v1711
      %s1713 = sadd.s32 %s461, 6
      %v1714 = vstv %s1713
      %vm1715 = vcmp.lt.s32.totalorder %v1714, %v460
      %v1716 = vsel %vm1715, 1, 0
      %1717 = vset.pattern.permute.xlu0 0
      %1718 = vperm.xlu0 %1717, %v1716
      %v1719 = vpop.permute.xlu0 %1718
      %vm1720 = vcmp.eq.s32.totalorder %v1719, 1
      %v1721 = vsel %vm1720, %v1712, %v1541
      %v1722 = vsel %vm1720, %v1710, %v1542
      %1723 = vmatprep.subr.mxu0 %v108
      %1724 = vmatpush1.msra.mxu0 %v107
      %1725 = vmatprep.subr.mxu0 %v112
      %1726 = vmatpush1.msra.mxu0 %v111
      %1727 = vmatprep.subr.mxu0 %v116
      %1728 = vmatpush1.msra.mxu0 %v115
      %1729 = vmatprep.subr.mxu0 %v120
      %1730 = vmatpush1.msra.mxu0 %v119
      %1731 = vmatprep.subr.mxu0 %v124
      %1732 = vmatpush1.msra.mxu0 %v123
      %1733 = vmatprep.subr.mxu0 %v128
      %1734 = vmatpush1.msra.mxu0 %v127
      %1735 = vmatprep.subr.mxu0 %v132
      %1736 = vmatpush1.msra.mxu0 %v131
      %1737 = vmatprep.subr.mxu0 %v136
      %1738 = vmatpush1.msra.mxu0 %v135
      %1739 = vmatprep.subr.mxu0 %v140
      %1740 = vmatpush1.msra.mxu0 %v139
      %1741 = vmatprep.subr.mxu0 %v144
      %1742 = vmatpush1.msra.mxu0 %v143
      %1743 = vmatprep.subr.mxu0 %v148
      %1744 = vmatpush1.msra.mxu0 %v147
      %1745 = vmatprep.subr.mxu0 %v152
      %1746 = vmatpush1.msra.mxu0 %v151
      %1747 = vmatprep.subr.mxu0 %v156
      %1748 = vmatpush1.msra.mxu0 %v155
      %1749 = vmatprep.subr.mxu0 %v160
      %1750 = vmatpush1.msra.mxu0 %v159
      %1751 = vmatprep.subr.mxu0 %v164
      %1752 = vmatpush1.msra.mxu0 %v163
      %1753 = vmatprep.subr.mxu0 %v168
      %1754 = vmatpush1.msra.mxu0 %v167
      %1755 = vmatprep.subr.mxu0 0.0
      %1756 = vmatpush1.msra.mxu0 0.0
      %1757 = vmatprep.subr.mxu0 0.0
      %1758 = vmatpush1.msra.mxu0 0.0
      %1759 = vmatprep.subr.mxu0 0.0
      %1760 = vmatpush1.msra.mxu0 0.0
      %1761 = vmatprep.subr.mxu0 0.0
      %1762 = vmatpush1.msra.mxu0 0.0
      %1763 = vmatprep.subr.mxu0 0.0
      %1764 = vmatpush1.msra.mxu0 0.0
      %1765 = vmatprep.subr.mxu0 0.0
      %1766 = vmatpush1.msra.mxu0 0.0
      %1767 = vmatprep.subr.mxu0 0.0
      %1768 = vmatpush1.msra.mxu0 0.0
      %1769 = vmatprep.subr.mxu0 0.0
      %1770 = vmatpush1.msra.mxu0 0.0
      %1771 = vmatprep.subr.mxu0 0.0
      %1772 = vmatpush1.msra.mxu0 0.0
      %1773 = vmatprep.subr.mxu0 0.0
      %1774 = vmatpush1.msra.mxu0 0.0
      %1775 = vmatprep.subr.mxu0 0.0
      %1776 = vmatpush1.msra.mxu0 0.0
      %1777 = vmatprep.subr.mxu0 0.0
      %1778 = vmatpush1.msra.mxu0 0.0
      %1779 = vmatprep.subr.mxu0 0.0
      %1780 = vmatpush1.msra.mxu0 0.0
      %1781 = vmatprep.subr.mxu0 0.0
      %1782 = vmatpush1.msra.mxu0 0.0
      %1783 = vmatprep.subr.mxu0 0.0
      %1784 = vmatpush1.msra.mxu0 0.0
      %1785 = vmatprep.subr.mxu0 0.0
      %1786 = vmatpush1.msra.mxu0 0.0
      %1787 = vmatprep.mubr.f32.mxu0 0.0
      %1788 = vmatmul.mubr.f32.gmra.mrb[0].mxu0 %v1721
      %v1789 = vpop.f32.mrb[0].mxu0
      %v1790 = vadd.f32 0.0, %v1789
      %v1791 = vpop.f32.mrb[0].mxu0
      %v1792 = vadd.f32 0.0, %v1791
      %1793 = vdwg.mxu0
      %1794 = vmatprep.subr.mxu0 %v110
      %1795 = vmatpush1.msra.mxu0 %v109
      %1796 = vmatprep.subr.mxu0 %v114
      %1797 = vmatpush1.msra.mxu0 %v113
      %1798 = vmatprep.subr.mxu0 %v118
      %1799 = vmatpush1.msra.mxu0 %v117
      %1800 = vmatprep.subr.mxu0 %v122
      %1801 = vmatpush1.msra.mxu0 %v121
      %1802 = vmatprep.subr.mxu0 %v126
      %1803 = vmatpush1.msra.mxu0 %v125
      %1804 = vmatprep.subr.mxu0 %v130
      %1805 = vmatpush1.msra.mxu0 %v129
      %1806 = vmatprep.subr.mxu0 %v134
      %1807 = vmatpush1.msra.mxu0 %v133
      %1808 = vmatprep.subr.mxu0 %v138
      %1809 = vmatpush1.msra.mxu0 %v137
      %1810 = vmatprep.subr.mxu0 %v142
      %1811 = vmatpush1.msra.mxu0 %v141
      %1812 = vmatprep.subr.mxu0 %v146
      %1813 = vmatpush1.msra.mxu0 %v145
      %1814 = vmatprep.subr.mxu0 %v150
      %1815 = vmatpush1.msra.mxu0 %v149
      %1816 = vmatprep.subr.mxu0 %v154
      %1817 = vmatpush1.msra.mxu0 %v153
      %1818 = vmatprep.subr.mxu0 %v158
      %1819 = vmatpush1.msra.mxu0 %v157
      %1820 = vmatprep.subr.mxu0 %v162
      %1821 = vmatpush1.msra.mxu0 %v161
      %1822 = vmatprep.subr.mxu0 %v166
      %1823 = vmatpush1.msra.mxu0 %v165
      %1824 = vmatprep.subr.mxu0 %v170
      %1825 = vmatpush1.msra.mxu0 %v169
      %1826 = vmatprep.subr.mxu0 0.0
      %1827 = vmatpush1.msra.mxu0 0.0
      %1828 = vmatprep.subr.mxu0 0.0
      %1829 = vmatpush1.msra.mxu0 0.0
      %1830 = vmatprep.subr.mxu0 0.0
      %1831 = vmatpush1.msra.mxu0 0.0
      %1832 = vmatprep.subr.mxu0 0.0
      %1833 = vmatpush1.msra.mxu0 0.0
      %1834 = vmatprep.subr.mxu0 0.0
      %1835 = vmatpush1.msra.mxu0 0.0
      %1836 = vmatprep.subr.mxu0 0.0
      %1837 = vmatpush1.msra.mxu0 0.0
      %1838 = vmatprep.subr.mxu0 0.0
      %1839 = vmatpush1.msra.mxu0 0.0
      %1840 = vmatprep.subr.mxu0 0.0
      %1841 = vmatpush1.msra.mxu0 0.0
      %1842 = vmatprep.subr.mxu0 0.0
      %1843 = vmatpush1.msra.mxu0 0.0
      %1844 = vmatprep.subr.mxu0 0.0
      %1845 = vmatpush1.msra.mxu0 0.0
      %1846 = vmatprep.subr.mxu0 0.0
      %1847 = vmatpush1.msra.mxu0 0.0
      %1848 = vmatprep.subr.mxu0 0.0
      %1849 = vmatpush1.msra.mxu0 0.0
      %1850 = vmatprep.subr.mxu0 0.0
      %1851 = vmatpush1.msra.mxu0 0.0
      %1852 = vmatprep.subr.mxu0 0.0
      %1853 = vmatpush1.msra.mxu0 0.0
      %1854 = vmatprep.subr.mxu0 0.0
      %1855 = vmatpush1.msra.mxu0 0.0
      %1856 = vmatprep.subr.mxu0 0.0
      %1857 = vmatpush1.msra.mxu0 0.0
      %1858 = vmatprep.mubr.f32.mxu0 0.0
      %1859 = vmatmul.mubr.f32.gmra.mrb[0].mxu0 %v1721
      %v1860 = vpop.f32.mrb[0].mxu0
      %v1861 = vadd.f32 0.0, %v1860
      %v1862 = vpop.f32.mrb[0].mxu0
      %v1863 = vadd.f32 0.0, %v1862
      %1864 = vdwg.mxu0
      %v1865 = vadd.f32 %v343, %v1790
      %v1866 = vadd.f32 %v345, %v1792
      %v1867 = vadd.f32 %v456, %v1861
      %v1868 = vadd.f32 %v458, %v1863
      %v1869 = vxor.u32 %v1865, 2147483648
      %v1870 = vxor.u32 %v1866, 2147483648
      %v1871 = vxor.u32 %v1867, 2147483648
      %v1872 = vmul.f32 %v1869, 1.442695
      %v1873 = vpow.pop %v1872
      %v1874 = vmul.f32 %v1870, 1.442695
      %v1875 = vpow.pop %v1874
      %v1876 = vmul.f32 %v1871, 1.442695
      %v1877 = vpow.pop %v1876
      %v1878 = vadd.f32 %v1873, 1.0
      %v1879 = vadd.f32 %v1875, 1.0
      %v1880 = vadd.f32 %v1877, 1.0
      %v1881 = vrcp.pop %v1878
      %v1882 = vmul.f32 1.0, %v1881
      %v1883 = vrcp.pop %v1879
      %v1884 = vmul.f32 1.0, %v1883
      %v1885 = vrcp.pop %v1880
      %v1886 = vmul.f32 1.0, %v1885
      %v1887 = vtanh.pop %v1868
      %v1888 = vmul.f32 %v1884, %v1722
      %v1889 = vmul.f32 %v1882, %v1887
      %v1890 = vadd.f32 %v1888, %v1889
      %v1891 = vtanh.pop %v1890
      %v1892 = vmul.f32 %v1886, %v1891
      %s1893 = sadd.s32 %s461, 7
      %v1894 = vstv %s1893
      %vm1895 = vcmp.lt.s32.totalorder %v1894, %v460
      %v1896 = vsel %vm1895, 1, 0
      %1897 = vset.pattern.permute.xlu0 0
      %1898 = vperm.xlu0 %1897, %v1896
      %v1899 = vpop.permute.xlu0 %1898
      %vm1900 = vcmp.eq.s32.totalorder %v1899, 1
      %v1901 = vsel %vm1900, %v1892, %v1721
      %v1902 = vsel %vm1900, %v1890, %v1722
      %1903 = vst [vmem:[#allocation2] sm:$0xff] %v1901
      %1904 = vst [vmem:[#allocation3] sm:$0xff] %v1902
    $region53: #{tpu_custom_call.1} parent=1 // pred_fallthru
      _
    %s1905 = ssub.s32 %s96, 1
    %p1906 = scmp.eq.s32.totalorder 0, %s1905
    // Predicated region
    $region54: #{tpu_custom_call.1} parent=1 // pred_check
      %p1907 = pneg %p1906
    $region55: #{tpu_custom_call.1} parent=1 // pred_check_branch
      %1909 = sbr.rel (%p1907) target = $region57
    $region56: #{tpu_custom_call.1} parent=1 // pred_region
      %v1910 = vld [vmem:[#allocation2] sm:$0xff]
      %v1911 = vld [vmem:[#allocation12] sm:$0xff]
      %v1912 = vld [vmem:[#allocation12 + $0x8] sm:$0xff]
      %v1913 = vld [vmem:[#allocation12 + $0x10] sm:$0xff]
      %v1914 = vld [vmem:[#allocation12 + $0x18] sm:$0xff]
      %v1915 = vld [vmem:[#allocation12 + $0x20] sm:$0xff]
      %v1916 = vld [vmem:[#allocation12 + $0x28] sm:$0xff]
      %v1917 = vld [vmem:[#allocation12 + $0x30] sm:$0xff]
      %v1918 = vld [vmem:[#allocation12 + $0x38] sm:$0xff]
      %v1919 = vld [vmem:[#allocation12 + $0x40] sm:$0xff]
      %v1920 = vld [vmem:[#allocation12 + $0x48] sm:$0xff]
      %v1921 = vld [vmem:[#allocation12 + $0x50] sm:$0xff]
      %v1922 = vld [vmem:[#allocation12 + $0x58] sm:$0xff]
      %v1923 = vld [vmem:[#allocation12 + $0x60] sm:$0xff]
      %v1924 = vld [vmem:[#allocation12 + $0x68] sm:$0xff]
      %v1925 = vld [vmem:[#allocation12 + $0x70] sm:$0xff]
      %v1926 = vld [vmem:[#allocation12 + $0x78] sm:$0xff]
      %v1927 = vld [vmem:[%s7] sm:$0x1]
      %v1929 = vlaneseq
      %v1930 = vshrl.u32 %v1929, 7
      %v1931 = vsub.s32 0, %v1930
      %v1932 = vrot.slane %v1927, %v1931
      %1934 = vmatprep.subr.mxu0 0.0
      %1935 = vmatpush1.msra.mxu0 %v1911
      %1936 = vmatprep.subr.mxu0 0.0
      %1937 = vmatpush1.msra.mxu0 %v1912
      %1938 = vmatprep.subr.mxu0 0.0
      %1939 = vmatpush1.msra.mxu0 %v1913
      %1940 = vmatprep.subr.mxu0 0.0
      %1941 = vmatpush1.msra.mxu0 %v1914
      %1942 = vmatprep.subr.mxu0 0.0
      %1943 = vmatpush1.msra.mxu0 %v1915
      %1944 = vmatprep.subr.mxu0 0.0
      %1945 = vmatpush1.msra.mxu0 %v1916
      %1946 = vmatprep.subr.mxu0 0.0
      %1947 = vmatpush1.msra.mxu0 %v1917
      %1948 = vmatprep.subr.mxu0 0.0
      %1949 = vmatpush1.msra.mxu0 %v1918
      %1950 = vmatprep.subr.mxu0 0.0
      %1951 = vmatpush1.msra.mxu0 %v1919
      %1952 = vmatprep.subr.mxu0 0.0
      %1953 = vmatpush1.msra.mxu0 %v1920
      %1954 = vmatprep.subr.mxu0 0.0
      %1955 = vmatpush1.msra.mxu0 %v1921
      %1956 = vmatprep.subr.mxu0 0.0
      %1957 = vmatpush1.msra.mxu0 %v1922
      %1958 = vmatprep.subr.mxu0 0.0
      %1959 = vmatpush1.msra.mxu0 %v1923
      %1960 = vmatprep.subr.mxu0 0.0
      %1961 = vmatpush1.msra.mxu0 %v1924
      %1962 = vmatprep.subr.mxu0 0.0
      %1963 = vmatpush1.msra.mxu0 %v1925
      %1964 = vmatprep.subr.mxu0 0.0
      %1965 = vmatpush1.msra.mxu0 %v1926
      %1966 = vmatprep.subr.mxu0 0.0
      %1967 = vmatpush1.msra.mxu0 0.0
      %1968 = vmatprep.subr.mxu0 0.0
      %1969 = vmatpush1.msra.mxu0 0.0
      %1970 = vmatprep.subr.mxu0 0.0
      %1971 = vmatpush1.msra.mxu0 0.0
      %1972 = vmatprep.subr.mxu0 0.0
      %1973 = vmatpush1.msra.mxu0 0.0
      %1974 = vmatprep.subr.mxu0 0.0
      %1975 = vmatpush1.msra.mxu0 0.0
      %1976 = vmatprep.subr.mxu0 0.0
      %1977 = vmatpush1.msra.mxu0 0.0
      %1978 = vmatprep.subr.mxu0 0.0
      %1979 = vmatpush1.msra.mxu0 0.0
      %1980 = vmatprep.subr.mxu0 0.0
      %1981 = vmatpush1.msra.mxu0 0.0
      %1982 = vmatprep.subr.mxu0 0.0
      %1983 = vmatpush1.msra.mxu0 0.0
      %1984 = vmatprep.subr.mxu0 0.0
      %1985 = vmatpush1.msra.mxu0 0.0
      %1986 = vmatprep.subr.mxu0 0.0
      %1987 = vmatpush1.msra.mxu0 0.0
      %1988 = vmatprep.subr.mxu0 0.0
      %1989 = vmatpush1.msra.mxu0 0.0
      %1990 = vmatprep.subr.mxu0 0.0
      %1991 = vmatpush1.msra.mxu0 0.0
      %1992 = vmatprep.subr.mxu0 0.0
      %1993 = vmatpush1.msra.mxu0 0.0
      %1994 = vmatprep.subr.mxu0 0.0
      %1995 = vmatpush1.msra.mxu0 0.0
      %1996 = vmatprep.subr.mxu0 0.0
      %1997 = vmatpush1.msra.mxu0 0.0
      %1998 = vmatprep.mubr.f32.mxu0 0.0
      %1999 = vmatmul.mubr.f32.gmra.mrb[0].mxu0 %v1910
      %v2000 = vpop.f32.mrb[0].mxu0
      %v2001 = vadd.f32 %v1932, %v2000
      %v2002 = vpop.f32.mrb[0].mxu0
      %2003 = vdwg.mxu0
      %2004 = vst [vmem:[#allocation14] sm:$0xff] %v2001
    $region57: #{tpu_custom_call.1} parent=1 // pred_fallthru
      _
    // Predicated region
    $region58: #{tpu_custom_call.1} parent=1 // pred_check
      _
    $region59: #{tpu_custom_call.1} parent=1 // pred_check_branch
      %2006 = sbr.rel (0) target = $region61
    $region60: #{tpu_custom_call.1} parent=1 // pred_region
      %s2008 = ssub.s32 128, 128
      %2009 = vsyncadd [#allocation8], %s2008
      %s2011 = sshll.u32 [#allocation14], 4
      %s2012 = int_to_ptr.vmem [resolvable:$true] %s2011
      %2014 = dma.vmem_to_hbm [thread:$0]  %s2012, 128, %s8, [#allocation8]
    $region61: #{tpu_custom_call.1} parent=1 // pred_fallthru
      _
    // Predicated region
    $region62: #{tpu_custom_call.1} parent=1 // pred_check
      _
    $region63: #{tpu_custom_call.1} parent=1 // pred_check_branch
      %2016 = sbr.rel (0) target = $region65
    $region64: #{tpu_custom_call.1} parent=1 // pred_region
      %2017 = dma.done [#allocation8], 128
    $region65: #{tpu_custom_call.1} parent=1 // pred_fallthru
      _
    %2018 = vsyncpa [#allocation7], 1
    %2019 = vsyncpa [#allocation10], 1
    %2020 = vsyncpa [#allocation13], 1
    %2021 = vsyncpa [#allocation8], 1

</llo_original>
